<compile_context>
chip_gen: v7x
topology: tpu7x:2x2x1
jax: 0.10.0
libtpu: 0.0.40
codegen_flags: <defaults>
</compile_context>

<pallas_src>
import functools

import jax
import jax.numpy as jnp
from jax.experimental import pallas as pl
from jax.experimental.pallas import tpu as pltpu

PAD = 128  # every feature dim (n_in1, n_in2, n_h) is zero-padded to 128 lanes

VMEM = pl.BlockSpec(memory_space=pltpu.MemorySpace.VMEM)
SMEM = pl.BlockSpec(memory_space=pltpu.MemorySpace.SMEM)


# ------------------------- fused DGI2Graphs kernel -------------------------
def _dgi_fused_kernel(scal_ref,   # SMEM f32[5]: alpha_a1, alpha_a2, alpha_b1, alpha_b2, b_bil
                      a_ref,      # bf16 [2N, 2N]   blockdiag(A_hat_a, A_hat_b)
                      x_ref,      # bf16 [2N, 2P]   rows: (graph a | graph b), lanes: (clean | corrupt)
                      w_ref,      # bf16 [6, 2P, 2P] row 2l: blockdiag(Wa_l, Wa_l); row 2l+1: blockdiag(Wb_l, Wb_l)
                      b_ref,      # f32  [6, 2P]     row 2l: graph-a bias layer l (tiled to both branches); 2l+1: graph b
                      wbilt_ref,  # bf16 [P, P]      W_bil^T (pre-transposed: v = c @ W_bil^T, no in-kernel transpose)
                      out_ref,    # f32  [1, 2N]     logits, lane-dense
                      *, n_h):
    f32, bf16 = jnp.float32, jnp.bfloat16
    two_n = a_ref.shape[0]
    n = two_n // 2
    two_p = x_ref.shape[1]
    p = two_p // 2

    a = a_ref[...]                                                     # bf16 (2N, 2N), lane-dense
    # rows 0..N-1 are graph a, rows N..2N-1 graph b (per-graph bias / PReLU slope)
    row_is_a = jax.lax.broadcasted_iota(jnp.int32, (two_n, two_p), 0) < n

    h = x_ref[...]                                                     # bf16 (2N, 2P)
    for l in range(3):
        # Per-graph feature transform; branches merged along lanes via blockdiag(W, W)
        # -> each matmul is 256 lanes wide (fills the 256-wide MXU on v6e/v7x).
        xw_a = jnp.dot(h[0:n, :], w_ref[2 * l], preferred_element_type=f32)
        xw_b = jnp.dot(h[n:two_n, :], w_ref[2 * l + 1], preferred_element_type=f32)
        xw = jnp.concatenate([xw_a, xw_b], axis=0).astype(bf16)        # (2N, 2P)
        # Propagation for BOTH graphs and BOTH branches: one 128x128x256 MXU matmul.
        z = jnp.dot(a, xw, preferred_element_type=f32)                 # f32 (2N, 2P)
        z = z + jnp.where(row_is_a,
                          b_ref[2 * l:2 * l + 1, :],
                          b_ref[2 * l + 1:2 * l + 2, :])
        if l < 2:
            alpha = jnp.where(row_is_a, scal_ref[l], scal_ref[2 + l])
            z = jnp.where(z >= 0, z, alpha * z)                        # PReLU in f32 (VPU)
            h = z.astype(bf16)
        else:
            h = z                                                      # last layer: no activation, f32

    # Encoder output = per-graph GCN outputs summed (assumption flagged in TODO).
    h1 = h[0:n, 0:p] + h[n:two_n, 0:p]                                 # clean   (N, P) f32
    h2 = h[0:n, p:two_p] + h[n:two_n, p:two_p]                         # corrupt (N, P) f32

    # AvgReadout (msk=None) + sigmoid; explicitly zero padded lanes of c.
    c = jax.nn.sigmoid(jnp.mean(h1, axis=0, keepdims=True))            # (1, P)
    lane = jax.lax.broadcasted_iota(jnp.int32, (1, p), 1)
    c = jnp.where(lane < n_h, c, 0.0).astype(bf16)

    # Discriminator (nn.Bilinear): sc[i] = h[i] @ W_bil @ c + b, both branches fused.
    v = jnp.dot(c, wbilt_ref[...], preferred_element_type=f32)         # (1, P) == (W_bil @ c)^T
    hh = jnp.concatenate([h1, h2], axis=0).astype(bf16)                # (2N, P)
    sc = jax.lax.dot_general(v.astype(bf16), hh,
                             dimension_numbers=(((1,), (1,)), ((), ())),
                             preferred_element_type=f32)               # (1, 2N)
    out_ref[...] = sc + scal_ref[4]                                    # single full-width lane-dense store


# ------------------------- one-time parameter packing -------------------------
def _pad2(w):
    return jnp.pad(w, ((0, PAD - w.shape[0]), (0, PAD - w.shape[1])))


def _blkdiag(w):
    wp = _pad2(w)
    z = jnp.zeros_like(wp)
    return jnp.block([[wp, z], [z, wp]])


def _bias_row(b):
    bp = jnp.pad(b, (0, PAD - b.shape[0]))
    return jnp.concatenate([bp, bp])       # tile over (clean | corrupt) lane halves


def prepare_params(params):
    """Pack / pad / cast all weights once, outside the per-call forward path."""
    bf = jnp.bfloat16
    w_blk = jnp.stack([
        _blkdiag(params["wa1"]), _blkdiag(params["wb1"]),
        _blkdiag(params["wa2"]), _blkdiag(params["wb2"]),
        _blkdiag(params["wa3"]), _blkdiag(params["wb3"]),
    ]).astype(bf)                                            # (6, 2P, 2P)
    bias = jnp.stack([
        _bias_row(params["ba1"]), _bias_row(params["bb1"]),
        _bias_row(params["ba2"]), _bias_row(params["bb2"]),
        _bias_row(params["ba3"]), _bias_row(params["bb3"]),
    ]).astype(jnp.float32)                                   # (6, 2P)
    wbil_t = _pad2(params["w_bil"]).T.astype(bf)             # (P, P), pre-transposed
    scal = jnp.concatenate([params["alpha_a1"], params["alpha_a2"],
                            params["alpha_b1"], params["alpha_b2"],
                            params["b_bil"]]).astype(jnp.float32)   # (5,)
    return scal, w_blk, bias, wbil_t


def prepare_adjacency(a_hat_a, a_hat_b):
    """blockdiag(A_hat_a, A_hat_b) -> lane-dense bf16 [2N, 2N]; built once."""
    n = a_hat_a.shape[0]
    z = jnp.zeros((n, n), jnp.float32)
    return jnp.block([[a_hat_a, z], [z, a_hat_b]]).astype(jnp.bfloat16)


# ------------------------------ forward ------------------------------
@functools.partial(jax.jit, static_argnames=("n_h",))
def dgi2graphs_forward(seq1a, seq1b, perm, a_comb, scal, w_blk, bias, wbil_t, *, n_h):
    n = seq1a.shape[0]

    # corruption_2_graphs: one node permutation applied to both graphs' features.
    xa = jnp.pad(seq1a, ((0, 0), (0, PAD - seq1a.shape[1])))
    xb = jnp.pad(seq1b, ((0, 0), (0, PAD - seq1b.shape[1])))
    x0 = jnp.concatenate([
        jnp.concatenate([xa, xa[perm]], axis=1),      # graph a rows: (clean | corrupt) lanes
        jnp.concatenate([xb, xb[perm]], axis=1),      # graph b rows
    ], axis=0).astype(jnp.bfloat16)                   # (2N, 2P)

    # CostEstimate so XLA can schedule around the custom call.
    flops = (3 * (2 * (2 * n * (2 * PAD) * (2 * PAD))        # 2 W-matmuls per layer
                  + 2 * (2 * n) * (2 * n) * (2 * PAD))       # 1 A-matmul per layer
             + 2 * 2 * PAD * PAD)                            # discriminator
    bytes_accessed = sum(a.size * a.dtype.itemsize
                         for a in (scal, a_comb, x0, w_blk, bias, wbil_t)) + 2 * n * 4
    cost = pl.CostEstimate(flops=flops, transcendentals=PAD, bytes_accessed=bytes_accessed)

    out = pl.pallas_call(
        functools.partial(_dgi_fused_kernel, n_h=n_h),
        out_shape=jax.ShapeDtypeStruct((1, 2 * n), jnp.float32),
        in_specs=[SMEM] + [VMEM] * 5,
        out_specs=VMEM,
        cost_estimate=cost,
    )(scal, a_comb, x0, w_blk, bias, wbil_t)
    return out[0]                                     # (2N,) == torch.cat((sc_1, sc_2), 0)


# ------------------------------ helpers / reference ------------------------------
def normalized_adjacency(edge_index, edge_weight, n):
    # A_hat = D^-1/2 (A + I) D^-1/2  (symmetric GCN normalization, undirected)
    a = jnp.zeros((n, n), jnp.float32)
    a = a.at[edge_index[0], edge_index[1]].set(edge_weight)
    a = a.at[edge_index[1], edge_index[0]].set(edge_weight)
    a = a * (1.0 - jnp.eye(n, dtype=jnp.float32))
    a = a + jnp.eye(n, dtype=jnp.float32)
    d_inv_sqrt = 1.0 / jnp.sqrt(jnp.sum(a, axis=1))
    return a * d_inv_sqrt[:, None] * d_inv_sqrt[None, :]


def xavier_uniform(key, shape):
    fan_in, fan_out = shape[0], shape[1]
    bound = (6.0 / (fan_in + fan_out)) ** 0.5
    return jax.random.uniform(key, shape, jnp.float32, -bound, bound)


def _reference_forward(seq1a, a_hat_a, seq1b, a_hat_b, perm, params):
    """Pure-JAX reference mirroring the kernel's bf16-matmul / f32-elementwise recipe."""
    bf16, f32 = jnp.bfloat16, jnp.float32

    def gcn3(a_hat, x, ws, bs, alphas):
        a = a_hat.astype(bf16)
        h = x.astype(bf16)
        for l in range(3):
            xw = jnp.dot(h, ws[l].astype(bf16), preferred_element_type=f32)
            z = jnp.dot(a, xw.astype(bf16), preferred_element_type=f32) + bs[l]
            if l < 2:
                z = jnp.where(z >= 0, z, alphas[l] * z)
                h = z.astype(bf16)
            else:
                h = z
        return h

    def encode(xa, xb):
        ha = gcn3(a_hat_a, xa, [params["wa1"], params["wa2"], params["wa3"]],
                  [params["ba1"], params["ba2"], params["ba3"]],
                  [params["alpha_a1"], params["alpha_a2"]])
        hb = gcn3(a_hat_b, xb, [params["wb1"], params["wb2"], params["wb3"]],
                  [params["bb1"], params["bb2"], params["bb3"]],
                  [params["alpha_b1"], params["alpha_b2"]])
        return ha + hb

    h1 = encode(seq1a, seq1b)
    h2 = encode(seq1a[perm], seq1b[perm])
    c = jax.nn.sigmoid(jnp.mean(h1, axis=0)).astype(bf16)
    v = jnp.dot(c, params["w_bil"].T.astype(bf16), preferred_element_type=f32)
    sc1 = jnp.dot(h1.astype(bf16), v.astype(bf16), preferred_element_type=f32) + params["b_bil"][0]
    sc2 = jnp.dot(h2.astype(bf16), v.astype(bf16), preferred_element_type=f32) + params["b_bil"][0]
    return jnp.concatenate([sc1, sc2], axis=0)


if __name__ == "__main__":
    N, n_in1, n_in2, n_h = 64, 32, 16, 32
    key = jax.random.PRNGKey(0)
    ks = jax.random.split(key, 10)

    seq1a = jax.random.normal(ks[0], (N, n_in1), jnp.float32)
    seq1b = jax.random.normal(ks[1], (N, n_in2), jnp.float32)
    perm = jax.random.permutation(ks[2], N)                 # corruption_2_graphs permutation

    src = jnp.arange(N)
    edge_index_a = jnp.stack([src, (src + 1) % N], axis=0)  # graph a: ring
    edge_weight_a = jnp.ones((N,), jnp.float32)
    edge_index_b = jnp.stack([src, (src + 3) % N], axis=0)  # graph b: stride-3 ring
    edge_weight_b = jnp.full((N,), 0.5, jnp.float32)
    a_hat_a = normalized_adjacency(edge_index_a, edge_weight_a, N)
    a_hat_b = normalized_adjacency(edge_index_b, edge_weight_b, N)

    params = {
        "wa1": xavier_uniform(ks[3], (n_in1, n_h)),
        "wa2": xavier_uniform(ks[4], (n_h, n_h)),
        "wa3": xavier_uniform(ks[5], (n_h, n_h)),
        "ba1": jnp.zeros((n_h,), jnp.float32),
        "ba2": jnp.zeros((n_h,), jnp.float32),
        "ba3": jnp.zeros((n_h,), jnp.float32),
        "wb1": xavier_uniform(ks[6], (n_in2, n_h)),
        "wb2": xavier_uniform(ks[7], (n_h, n_h)),
        "wb3": xavier_uniform(ks[8], (n_h, n_h)),
        "bb1": jnp.zeros((n_h,), jnp.float32),
        "bb2": jnp.zeros((n_h,), jnp.float32),
        "bb3": jnp.zeros((n_h,), jnp.float32),
        "alpha_a1": jnp.array([0.25], jnp.float32),         # PReLU slopes (torch default)
        "alpha_a2": jnp.array([0.25], jnp.float32),
        "alpha_b1": jnp.array([0.25], jnp.float32),
        "alpha_b2": jnp.array([0.25], jnp.float32),
        "w_bil": xavier_uniform(ks[9], (n_h, n_h)),         # nn.Bilinear weight[0]
        "b_bil": jnp.zeros((1,), jnp.float32),              # nn.Bilinear bias (filled 0.0)
    }

    # One-time packing, kept out of the per-call forward path.
    a_comb = prepare_adjacency(a_hat_a, a_hat_b)
    scal, w_blk, bias, wbil_t = prepare_params(params)

    logits = dgi2graphs_forward(seq1a, seq1b, perm, a_comb, scal, w_blk, bias, wbil_t, n_h=n_h)
    logits = jax.block_until_ready(logits)

    ref = _reference_forward(seq1a, a_hat_a, seq1b, a_hat_b, perm, params)
    assert logits.shape == (2 * N,) and logits.dtype == jnp.float32
    assert bool(jnp.all(jnp.isfinite(logits)))
    assert bool(jnp.allclose(logits, ref, rtol=5e-2, atol=5e-2))
    print("KERNEL_OK")
</pallas_src>

<mosaic_0001>
module attributes {stable_mosaic.version = 11 : i64} {
  func.func @_dgi_fused_kernel(%arg0: memref<5xf32, #tpu.memory_space<smem>>, %arg1: memref<128x128xbf16, #tpu.memory_space<vmem>>, %arg2: memref<128x256xbf16, #tpu.memory_space<vmem>>, %arg3: memref<6x256x256xbf16, #tpu.memory_space<vmem>>, %arg4: memref<6x256xf32, #tpu.memory_space<vmem>>, %arg5: memref<128x128xbf16, #tpu.memory_space<vmem>>, %arg6: memref<1x128xf32, #tpu.memory_space<vmem>>) attributes {dimension_semantics = [], scalar_prefetch = 0 : i64, scratch_operands = 0 : i64, tpu.core_type = #tpu.core_type<tc>} {
    %c0 = arith.constant 0 : index
    %c0_0 = arith.constant 0 : index
    %0 = vector.load %arg1[%c0, %c0_0] : memref<128x128xbf16, #tpu.memory_space<vmem>>, vector<128x128xbf16>
    %1 = tpu.iota {dimensions = array<i32: 0>} : vector<128x256xi32>
    %c64_i32 = arith.constant 64 : i32
    %2 = vector.broadcast %c64_i32 : i32 to vector<128x256xi32>
    %3 = arith.cmpi slt, %1, %2 : vector<128x256xi32>
    %c0_1 = arith.constant 0 : index
    %c0_2 = arith.constant 0 : index
    %4 = vector.load %arg2[%c0_1, %c0_2] : memref<128x256xbf16, #tpu.memory_space<vmem>>, vector<128x256xbf16>
    %5 = vector.extract_strided_slice %4 {offsets = [0, 0], sizes = [64, 256], strides = [1, 1]} : vector<128x256xbf16> to vector<64x256xbf16>
    %c0_3 = arith.constant 0 : index
    %c0_4 = arith.constant 0 : index
    %c0_5 = arith.constant 0 : index
    %6 = vector.load %arg3[%c0_3, %c0_4, %c0_5] : memref<6x256x256xbf16, #tpu.memory_space<vmem>>, vector<1x256x256xbf16>
    %7 = vector.shape_cast %6 : vector<1x256x256xbf16> to vector<256x256xbf16>
    %cst = arith.constant dense<0.000000e+00> : vector<64x256xf32>
    %8 = tpu.matmul %5, %7, %cst {dimension_numbers = #tpu.dot_dimension_numbers<[1], [0], [0], [1], [0, 0, 1, 1], [], []>} : vector<64x256xbf16>, vector<256x256xbf16>, vector<64x256xf32> -> vector<64x256xf32>
    %9 = vector.extract_strided_slice %4 {offsets = [64, 0], sizes = [64, 256], strides = [1, 1]} : vector<128x256xbf16> to vector<64x256xbf16>
    %c1 = arith.constant 1 : index
    %c0_6 = arith.constant 0 : index
    %c0_7 = arith.constant 0 : index
    %10 = vector.load %arg3[%c1, %c0_6, %c0_7] : memref<6x256x256xbf16, #tpu.memory_space<vmem>>, vector<1x256x256xbf16>
    %11 = vector.shape_cast %10 : vector<1x256x256xbf16> to vector<256x256xbf16>
    %cst_8 = arith.constant dense<0.000000e+00> : vector<64x256xf32>
    %12 = tpu.matmul %9, %11, %cst_8 {dimension_numbers = #tpu.dot_dimension_numbers<[1], [0], [0], [1], [0, 0, 1, 1], [], []>} : vector<64x256xbf16>, vector<256x256xbf16>, vector<64x256xf32> -> vector<64x256xf32>
    %13 = tpu.concatenate %8, %12 in 0 : vector<64x256xf32>, vector<64x256xf32> -> vector<128x256xf32>
    %14 = arith.truncf %13 : vector<128x256xf32> to vector<128x256xbf16>
    %cst_9 = arith.constant dense<0.000000e+00> : vector<128x256xf32>
    %15 = tpu.matmul %0, %14, %cst_9 {dimension_numbers = #tpu.dot_dimension_numbers<[1], [0], [0], [1], [0, 0, 1, 1], [], []>} : vector<128x128xbf16>, vector<128x256xbf16>, vector<128x256xf32> -> vector<128x256xf32>
    %c0_10 = arith.constant 0 : index
    %c0_11 = arith.constant 0 : index
    %16 = vector.load %arg4[%c0_10, %c0_11] : memref<6x256xf32, #tpu.memory_space<vmem>>, vector<1x256xf32>
    %c1_12 = arith.constant 1 : index
    %c0_13 = arith.constant 0 : index
    %17 = vector.load %arg4[%c1_12, %c0_13] : memref<6x256xf32, #tpu.memory_space<vmem>>, vector<1x256xf32>
    %18 = vector.shape_cast %16 : vector<1x256xf32> to vector<1x256xf32>
    %19 = vector.broadcast %18 : vector<1x256xf32> to vector<128x256xf32>
    %20 = vector.shape_cast %17 : vector<1x256xf32> to vector<1x256xf32>
    %21 = vector.broadcast %20 : vector<1x256xf32> to vector<128x256xf32>
    %22 = arith.select %3, %19, %21 : vector<128x256xi1>, vector<128x256xf32>
    %23 = arith.addf %15, %22 : vector<128x256xf32>
    %c0_14 = arith.constant 0 : index
    %24 = memref.load %arg0[%c0_14] : memref<5xf32, #tpu.memory_space<smem>>
    %c2 = arith.constant 2 : index
    %25 = memref.load %arg0[%c2] : memref<5xf32, #tpu.memory_space<smem>>
    %26 = vector.broadcast %24 : f32 to vector<128x256xf32>
    %27 = vector.broadcast %25 : f32 to vector<128x256xf32>
    %28 = arith.select %3, %26, %27 : vector<128x256xi1>, vector<128x256xf32>
    %cst_15 = arith.constant 0.000000e+00 : f32
    %29 = vector.broadcast %cst_15 : f32 to vector<128x256xf32>
    %30 = arith.cmpf oge, %23, %29 : vector<128x256xf32>
    %31 = arith.mulf %28, %23 : vector<128x256xf32>
    %32 = arith.select %30, %23, %31 : vector<128x256xi1>, vector<128x256xf32>
    %33 = arith.truncf %32 : vector<128x256xf32> to vector<128x256xbf16>
    %34 = vector.extract_strided_slice %33 {offsets = [0, 0], sizes = [64, 256], strides = [1, 1]} : vector<128x256xbf16> to vector<64x256xbf16>
    %c2_16 = arith.constant 2 : index
    %c0_17 = arith.constant 0 : index
    %c0_18 = arith.constant 0 : index
    %35 = vector.load %arg3[%c2_16, %c0_17, %c0_18] : memref<6x256x256xbf16, #tpu.memory_space<vmem>>, vector<1x256x256xbf16>
    %36 = vector.shape_cast %35 : vector<1x256x256xbf16> to vector<256x256xbf16>
    %cst_19 = arith.constant dense<0.000000e+00> : vector<64x256xf32>
    %37 = tpu.matmul %34, %36, %cst_19 {dimension_numbers = #tpu.dot_dimension_numbers<[1], [0], [0], [1], [0, 0, 1, 1], [], []>} : vector<64x256xbf16>, vector<256x256xbf16>, vector<64x256xf32> -> vector<64x256xf32>
    %38 = vector.extract_strided_slice %33 {offsets = [64, 0], sizes = [64, 256], strides = [1, 1]} : vector<128x256xbf16> to vector<64x256xbf16>
    %c3 = arith.constant 3 : index
    %c0_20 = arith.constant 0 : index
    %c0_21 = arith.constant 0 : index
    %39 = vector.load %arg3[%c3, %c0_20, %c0_21] : memref<6x256x256xbf16, #tpu.memory_space<vmem>>, vector<1x256x256xbf16>
    %40 = vector.shape_cast %39 : vector<1x256x256xbf16> to vector<256x256xbf16>
    %cst_22 = arith.constant dense<0.000000e+00> : vector<64x256xf32>
    %41 = tpu.matmul %38, %40, %cst_22 {dimension_numbers = #tpu.dot_dimension_numbers<[1], [0], [0], [1], [0, 0, 1, 1], [], []>} : vector<64x256xbf16>, vector<256x256xbf16>, vector<64x256xf32> -> vector<64x256xf32>
    %42 = tpu.concatenate %37, %41 in 0 : vector<64x256xf32>, vector<64x256xf32> -> vector<128x256xf32>
    %43 = arith.truncf %42 : vector<128x256xf32> to vector<128x256xbf16>
    %cst_23 = arith.constant dense<0.000000e+00> : vector<128x256xf32>
    %44 = tpu.matmul %0, %43, %cst_23 {dimension_numbers = #tpu.dot_dimension_numbers<[1], [0], [0], [1], [0, 0, 1, 1], [], []>} : vector<128x128xbf16>, vector<128x256xbf16>, vector<128x256xf32> -> vector<128x256xf32>
    %c2_24 = arith.constant 2 : index
    %c0_25 = arith.constant 0 : index
    %45 = vector.load %arg4[%c2_24, %c0_25] : memref<6x256xf32, #tpu.memory_space<vmem>>, vector<1x256xf32>
    %c3_26 = arith.constant 3 : index
    %c0_27 = arith.constant 0 : index
    %46 = vector.load %arg4[%c3_26, %c0_27] : memref<6x256xf32, #tpu.memory_space<vmem>>, vector<1x256xf32>
    %47 = vector.shape_cast %45 : vector<1x256xf32> to vector<1x256xf32>
    %48 = vector.broadcast %47 : vector<1x256xf32> to vector<128x256xf32>
    %49 = vector.shape_cast %46 : vector<1x256xf32> to vector<1x256xf32>
    %50 = vector.broadcast %49 : vector<1x256xf32> to vector<128x256xf32>
    %51 = arith.select %3, %48, %50 : vector<128x256xi1>, vector<128x256xf32>
    %52 = arith.addf %44, %51 : vector<128x256xf32>
    %c1_28 = arith.constant 1 : index
    %53 = memref.load %arg0[%c1_28] : memref<5xf32, #tpu.memory_space<smem>>
    %c3_29 = arith.constant 3 : index
    %54 = memref.load %arg0[%c3_29] : memref<5xf32, #tpu.memory_space<smem>>
    %55 = vector.broadcast %53 : f32 to vector<128x256xf32>
    %56 = vector.broadcast %54 : f32 to vector<128x256xf32>
    %57 = arith.select %3, %55, %56 : vector<128x256xi1>, vector<128x256xf32>
    %cst_30 = arith.constant 0.000000e+00 : f32
    %58 = vector.broadcast %cst_30 : f32 to vector<128x256xf32>
    %59 = arith.cmpf oge, %52, %58 : vector<128x256xf32>
    %60 = arith.mulf %57, %52 : vector<128x256xf32>
    %61 = arith.select %59, %52, %60 : vector<128x256xi1>, vector<128x256xf32>
    %62 = arith.truncf %61 : vector<128x256xf32> to vector<128x256xbf16>
    %63 = vector.extract_strided_slice %62 {offsets = [0, 0], sizes = [64, 256], strides = [1, 1]} : vector<128x256xbf16> to vector<64x256xbf16>
    %c4 = arith.constant 4 : index
    %c0_31 = arith.constant 0 : index
    %c0_32 = arith.constant 0 : index
    %64 = vector.load %arg3[%c4, %c0_31, %c0_32] : memref<6x256x256xbf16, #tpu.memory_space<vmem>>, vector<1x256x256xbf16>
    %65 = vector.shape_cast %64 : vector<1x256x256xbf16> to vector<256x256xbf16>
    %cst_33 = arith.constant dense<0.000000e+00> : vector<64x256xf32>
    %66 = tpu.matmul %63, %65, %cst_33 {dimension_numbers = #tpu.dot_dimension_numbers<[1], [0], [0], [1], [0, 0, 1, 1], [], []>} : vector<64x256xbf16>, vector<256x256xbf16>, vector<64x256xf32> -> vector<64x256xf32>
    %67 = vector.extract_strided_slice %62 {offsets = [64, 0], sizes = [64, 256], strides = [1, 1]} : vector<128x256xbf16> to vector<64x256xbf16>
    %c5 = arith.constant 5 : index
    %c0_34 = arith.constant 0 : index
    %c0_35 = arith.constant 0 : index
    %68 = vector.load %arg3[%c5, %c0_34, %c0_35] : memref<6x256x256xbf16, #tpu.memory_space<vmem>>, vector<1x256x256xbf16>
    %69 = vector.shape_cast %68 : vector<1x256x256xbf16> to vector<256x256xbf16>
    %cst_36 = arith.constant dense<0.000000e+00> : vector<64x256xf32>
    %70 = tpu.matmul %67, %69, %cst_36 {dimension_numbers = #tpu.dot_dimension_numbers<[1], [0], [0], [1], [0, 0, 1, 1], [], []>} : vector<64x256xbf16>, vector<256x256xbf16>, vector<64x256xf32> -> vector<64x256xf32>
    %71 = tpu.concatenate %66, %70 in 0 : vector<64x256xf32>, vector<64x256xf32> -> vector<128x256xf32>
    %72 = arith.truncf %71 : vector<128x256xf32> to vector<128x256xbf16>
    %cst_37 = arith.constant dense<0.000000e+00> : vector<128x256xf32>
    %73 = tpu.matmul %0, %72, %cst_37 {dimension_numbers = #tpu.dot_dimension_numbers<[1], [0], [0], [1], [0, 0, 1, 1], [], []>} : vector<128x128xbf16>, vector<128x256xbf16>, vector<128x256xf32> -> vector<128x256xf32>
    %c4_38 = arith.constant 4 : index
    %c0_39 = arith.constant 0 : index
    %74 = vector.load %arg4[%c4_38, %c0_39] : memref<6x256xf32, #tpu.memory_space<vmem>>, vector<1x256xf32>
    %c5_40 = arith.constant 5 : index
    %c0_41 = arith.constant 0 : index
    %75 = vector.load %arg4[%c5_40, %c0_41] : memref<6x256xf32, #tpu.memory_space<vmem>>, vector<1x256xf32>
    %76 = vector.shape_cast %74 : vector<1x256xf32> to vector<1x256xf32>
    %77 = vector.broadcast %76 : vector<1x256xf32> to vector<128x256xf32>
    %78 = vector.shape_cast %75 : vector<1x256xf32> to vector<1x256xf32>
    %79 = vector.broadcast %78 : vector<1x256xf32> to vector<128x256xf32>
    %80 = arith.select %3, %77, %79 : vector<128x256xi1>, vector<128x256xf32>
    %81 = arith.addf %73, %80 : vector<128x256xf32>
    %82 = vector.extract_strided_slice %81 {offsets = [0, 0], sizes = [64, 128], strides = [1, 1]} : vector<128x256xf32> to vector<64x128xf32>
    %83 = vector.extract_strided_slice %81 {offsets = [64, 0], sizes = [64, 128], strides = [1, 1]} : vector<128x256xf32> to vector<64x128xf32>
    %84 = arith.addf %82, %83 : vector<64x128xf32>
    %85 = vector.extract_strided_slice %81 {offsets = [0, 128], sizes = [64, 128], strides = [1, 1]} : vector<128x256xf32> to vector<64x128xf32>
    %86 = vector.extract_strided_slice %81 {offsets = [64, 128], sizes = [64, 128], strides = [1, 1]} : vector<128x256xf32> to vector<64x128xf32>
    %87 = arith.addf %85, %86 : vector<64x128xf32>
    %cst_42 = arith.constant dense<0.000000e+00> : vector<128xf32>
    %88 = vector.multi_reduction <add>, %84, %cst_42 [0] : vector<64x128xf32> to vector<128xf32>
    %89 = vector.shape_cast %88 : vector<128xf32> to vector<1x128xf32>
    %cst_43 = arith.constant 6.400000e+01 : f32
    %90 = vector.broadcast %cst_43 : f32 to vector<1x128xf32>
    %91 = arith.divf %89, %90 : vector<1x128xf32>
    %92 = arith.negf %91 : vector<1x128xf32>
    %93 = math.exp %92 : vector<1x128xf32>
    %cst_44 = arith.constant 1.000000e+00 : f32
    %94 = vector.broadcast %cst_44 : f32 to vector<1x128xf32>
    %95 = arith.addf %94, %93 : vector<1x128xf32>
    %96 = arith.divf %94, %95 : vector<1x128xf32>
    %97 = tpu.iota {dimensions = array<i32: 1>} : vector<1x128xi32>
    %c32_i32 = arith.constant 32 : i32
    %98 = vector.broadcast %c32_i32 : i32 to vector<1x128xi32>
    %99 = arith.cmpi slt, %97, %98 : vector<1x128xi32>
    %cst_45 = arith.constant 0.000000e+00 : f32
    %100 = vector.broadcast %cst_45 : f32 to vector<1x128xf32>
    %101 = arith.select %99, %96, %100 : vector<1x128xi1>, vector<1x128xf32>
    %102 = arith.truncf %101 : vector<1x128xf32> to vector<1x128xbf16>
    %c0_46 = arith.constant 0 : index
    %c0_47 = arith.constant 0 : index
    %103 = vector.load %arg5[%c0_46, %c0_47] : memref<128x128xbf16, #tpu.memory_space<vmem>>, vector<128x128xbf16>
    %cst_48 = arith.constant dense<0.000000e+00> : vector<1x128xf32>
    %104 = tpu.matmul %102, %103, %cst_48 {dimension_numbers = #tpu.dot_dimension_numbers<[1], [0], [0], [1], [0, 0, 1, 1], [], []>} : vector<1x128xbf16>, vector<128x128xbf16>, vector<1x128xf32> -> vector<1x128xf32>
    %105 = tpu.concatenate %84, %87 in 0 : vector<64x128xf32>, vector<64x128xf32> -> vector<128x128xf32>
    %106 = arith.truncf %105 : vector<128x128xf32> to vector<128x128xbf16>
    %107 = arith.truncf %104 : vector<1x128xf32> to vector<1x128xbf16>
    %cst_49 = arith.constant dense<0.000000e+00> : vector<1x128xf32>
    %108 = tpu.matmul %107, %106, %cst_49 {dimension_numbers = #tpu.dot_dimension_numbers<[1], [1], [0], [0], [0, 0, 1, 0], [], []>} : vector<1x128xbf16>, vector<128x128xbf16>, vector<1x128xf32> -> vector<1x128xf32>
    %c4_50 = arith.constant 4 : index
    %109 = memref.load %arg0[%c4_50] : memref<5xf32, #tpu.memory_space<smem>>
    %110 = vector.broadcast %109 : f32 to vector<1x128xf32>
    %111 = arith.addf %108, %110 : vector<1x128xf32>
    %c0_51 = arith.constant 0 : index
    %c0_52 = arith.constant 0 : index
    %112 = vector.load %arg6[%c0_51, %c0_52] : memref<1x128xf32, #tpu.memory_space<vmem>>, vector<1x128xf32>
    tpu.vector_store %arg6[%c0_51, %c0_52], %111 {strides = array<i32>} : memref<1x128xf32, #tpu.memory_space<vmem>>, vector<1x128xf32>,
    return
  }
}

</mosaic_0001>

<llo_original>
// kernel: dgi2graphs_forward.1
$region0: #{dgi2graphs_forward.1}
  #allocation0 [shape = 'u32[]', space=smem, size = 0x4, offset = 0x4, fixed_abs, tag = 'smem constant byte address 0x4 - core index']
  #allocation1 [shape = 'u32[144,128]{1,0:T(1,128)}', space=vmem, size = 0x12000, scoped, tag = 'internal scratch']
  %s0 = inlined_call_operand.vmem [shape: f32[5], index: 0, kind: input, shape index: {}]
  %s1 = inlined_call_operand.vmem [shape: bf16[128,128], index: 1, kind: input, shape index: {}]
  %s2 = inlined_call_operand.vmem [shape: bf16[128,256], index: 2, kind: input, shape index: {}]
  %s3 = inlined_call_operand.hbm [shape: bf16[6,256,256], index: 3, kind: input, shape index: {}]
  %s4 = inlined_call_operand.vmem [shape: f32[6,256], index: 4, kind: input, shape index: {}]
  %s5 = inlined_call_operand.vmem [shape: bf16[128,128], index: 5, kind: input, shape index: {}]
  %s6 = inlined_call_operand.hbm [shape: f32[1,128], index: 6, kind: output, shape index: {}]
  %s7 = sld [smem:[#allocation0]]
  $region42: #{dgi2graphs_forward.1} parent=0
    _
  %s9 = ssub.s32 1, %s7
  %s10 = scalar_select 0, %s9, %s7
  $region1: #{dgi2graphs_forward.1} parent=0
    #allocation2 [shape = 'u8[512]{0}', space=smem, size = 0x200, scoped, tag = 'input window, operand 0, single buffered']
    #allocation3 [shape = 's32[1]{0}', space=sflag, size = 0x4, scoped, tag = 'scoped memory for dgi2graphs_forward.1']
    #allocation4 [shape = 's32[1]{0}', space=sflag, size = 0x4, scoped, tag = 'scoped memory for dgi2graphs_forward.1']
    #allocation5 [shape = 's32[1]{0}', space=sflag, size = 0x4, scoped, tag = 'scoped memory for dgi2graphs_forward.1']
    #allocation6 [shape = 'u8[786432]{0}', space=vmem, size = 0xc0000, scoped, tag = 'input window, operand 3, single buffered']
    #allocation7 [shape = 'u8[512]{0}', space=vmem, size = 0x400, scoped, tag = 'output window, operand 0, single buffered']
    %11 = vsyncpa [#allocation5], 0
    %12 = vsyncpa [#allocation3], 0
    %13 = vsyncpa [#allocation4], 0
    // Predicated region
    $region2: #{dgi2graphs_forward.1} parent=1 // pred_check
      _
    $region3: #{dgi2graphs_forward.1} parent=1 // pred_check_branch
      %15 = sbr.rel (0) target = $region5
    $region4: #{dgi2graphs_forward.1} parent=1 // pred_region
      %s17 = ssub.s32 16, 16
      %18 = vsyncadd [#allocation5], %s17
      %s20 = sshll.u32 %s0, 4
      %s21 = int_to_ptr.vmem [resolvable:$true] %s20
      %23 = dma.vmem_to_smem %s21, 16, [#allocation2], [#allocation5]
    $region5: #{dgi2graphs_forward.1} parent=1 // pred_fallthru
      _
    // Predicated region
    $region6: #{dgi2graphs_forward.1} parent=1 // pred_check
      _
    $region7: #{dgi2graphs_forward.1} parent=1 // pred_check_branch
      %25 = sbr.rel (0) target = $region9
    $region8: #{dgi2graphs_forward.1} parent=1 // pred_region
      _
    $region9: #{dgi2graphs_forward.1} parent=1 // pred_fallthru
      _
    // Predicated region
    $region10: #{dgi2graphs_forward.1} parent=1 // pred_check
      _
    $region11: #{dgi2graphs_forward.1} parent=1 // pred_check_branch
      %27 = sbr.rel (0) target = $region13
    $region12: #{dgi2graphs_forward.1} parent=1 // pred_region
      _
    $region13: #{dgi2graphs_forward.1} parent=1 // pred_fallthru
      _
    // Predicated region
    $region14: #{dgi2graphs_forward.1} parent=1 // pred_check
      _
    $region15: #{dgi2graphs_forward.1} parent=1 // pred_check_branch
      %29 = sbr.rel (0) target = $region17
    $region16: #{dgi2graphs_forward.1} parent=1 // pred_region
      %s31 = ssub.s32 24576, 24576
      %32 = vsyncadd [#allocation3], %s31
      %s33 = sshll.u32 [#allocation6], 4
      %s34 = int_to_ptr.vmem [resolvable:$true] %s33
      %39 = dma.hbm_to_vmem [thread:$0]  %s3, 24576, %s34, [#allocation3], 128, 128, 8
    $region17: #{dgi2graphs_forward.1} parent=1 // pred_fallthru
      _
    // Predicated region
    $region18: #{dgi2graphs_forward.1} parent=1 // pred_check
      _
    $region19: #{dgi2graphs_forward.1} parent=1 // pred_check_branch
      %41 = sbr.rel (0) target = $region21
    $region20: #{dgi2graphs_forward.1} parent=1 // pred_region
      _
    $region21: #{dgi2graphs_forward.1} parent=1 // pred_fallthru
      _
    // Predicated region
    $region22: #{dgi2graphs_forward.1} parent=1 // pred_check
      _
    $region23: #{dgi2graphs_forward.1} parent=1 // pred_check_branch
      %43 = sbr.rel (0) target = $region25
    $region24: #{dgi2graphs_forward.1} parent=1 // pred_region
      _
    $region25: #{dgi2graphs_forward.1} parent=1 // pred_fallthru
      _
    // Predicated region
    $region26: #{dgi2graphs_forward.1} parent=1 // pred_check
      _
    $region27: #{dgi2graphs_forward.1} parent=1 // pred_check_branch
      %45 = sbr.rel (0) target = $region29
    $region28: #{dgi2graphs_forward.1} parent=1 // pred_region
      %46 = dma.done [#allocation5], 16
    $region29: #{dgi2graphs_forward.1} parent=1 // pred_fallthru
      _
    // Predicated region
    $region30: #{dgi2graphs_forward.1} parent=1 // pred_check
      _
    $region31: #{dgi2graphs_forward.1} parent=1 // pred_check_branch
      %48 = sbr.rel (0) target = $region33
    $region32: #{dgi2graphs_forward.1} parent=1 // pred_region
      %49 = dma.done [#allocation3], 24576
    $region33: #{dgi2graphs_forward.1} parent=1 // pred_fallthru
      _
    %50 = sfence
    %v52 = vld [vmem:[%s1] sm:$0xf]
    %v53 = vld [vmem:[%s1 + $0x4] sm:$0xf]
    %v54 = vld [vmem:[%s1 + $0x8] sm:$0xf]
    %v55 = vld [vmem:[%s1 + $0xc] sm:$0xf]
    %v56 = vld [vmem:[%s1 + $0x10] sm:$0xf]
    %v57 = vld [vmem:[%s1 + $0x14] sm:$0xf]
    %v58 = vld [vmem:[%s1 + $0x18] sm:$0xf]
    %v59 = vld [vmem:[%s1 + $0x1c] sm:$0xf]
    %v60 = vld [vmem:[%s1 + $0x20] sm:$0xf]
    %v61 = vld [vmem:[%s1 + $0x24] sm:$0xf]
    %v62 = vld [vmem:[%s1 + $0x28] sm:$0xf]
    %v63 = vld [vmem:[%s1 + $0x2c] sm:$0xf]
    %v64 = vld [vmem:[%s1 + $0x30] sm:$0xf]
    %v65 = vld [vmem:[%s1 + $0x34] sm:$0xf]
    %v66 = vld [vmem:[%s1 + $0x38] sm:$0xf]
    %v67 = vld [vmem:[%s1 + $0x3c] sm:$0xf]
    %v68 = vlaneseq
    %v69 = vshrl.u32 %v68, 7
    %v70 = vadd.s32 %v69, 8
    %v71 = vadd.s32 %v69, 16
    %v72 = vadd.s32 %v69, 24
    %v73 = vadd.s32 %v69, 32
    %v74 = vadd.s32 %v69, 40
    %v75 = vadd.s32 %v69, 48
    %v76 = vadd.s32 %v69, 56
    %v77 = vadd.s32 %v69, 64
    %v78 = vadd.s32 %v69, 72
    %v79 = vadd.s32 %v69, 80
    %v80 = vadd.s32 %v69, 88
    %v81 = vadd.s32 %v69, 96
    %v82 = vadd.s32 %v69, 104
    %v83 = vadd.s32 %v69, 112
    %v84 = vadd.s32 %v69, 120
    %vm85 = vcmp.lt.s32.totalorder %v69, 64
    %vm86 = vcmp.lt.s32.totalorder %v70, 64
    %vm87 = vcmp.lt.s32.totalorder %v71, 64
    %vm88 = vcmp.lt.s32.totalorder %v72, 64
    %vm89 = vcmp.lt.s32.totalorder %v73, 64
    %vm90 = vcmp.lt.s32.totalorder %v74, 64
    %vm91 = vcmp.lt.s32.totalorder %v75, 64
    %vm92 = vcmp.lt.s32.totalorder %v76, 64
    %vm93 = vcmp.lt.s32.totalorder %v77, 64
    %vm94 = vcmp.lt.s32.totalorder %v78, 64
    %vm95 = vcmp.lt.s32.totalorder %v79, 64
    %vm96 = vcmp.lt.s32.totalorder %v80, 64
    %vm97 = vcmp.lt.s32.totalorder %v81, 64
    %vm98 = vcmp.lt.s32.totalorder %v82, 64
    %vm99 = vcmp.lt.s32.totalorder %v83, 64
    %vm100 = vcmp.lt.s32.totalorder %v84, 64
    %v101 = vld [vmem:[%s2] sm:$0xff]
    %v102 = vld [vmem:[%s2 + $0x8] sm:$0xff]
    %v103 = vld [vmem:[%s2 + $0x10] sm:$0xff]
    %v104 = vld [vmem:[%s2 + $0x18] sm:$0xff]
    %v105 = vld [vmem:[%s2 + $0x20] sm:$0xff]
    %v106 = vld [vmem:[%s2 + $0x28] sm:$0xff]
    %v107 = vld [vmem:[%s2 + $0x30] sm:$0xff]
    %v108 = vld [vmem:[%s2 + $0x38] sm:$0xff]
    %v109 = vld [vmem:[%s2 + $0x40] sm:$0xff]
    %v110 = vld [vmem:[%s2 + $0x48] sm:$0xff]
    %v111 = vld [vmem:[%s2 + $0x50] sm:$0xff]
    %v112 = vld [vmem:[%s2 + $0x58] sm:$0xff]
    %v113 = vld [vmem:[%s2 + $0x60] sm:$0xff]
    %v114 = vld [vmem:[%s2 + $0x68] sm:$0xff]
    %v115 = vld [vmem:[%s2 + $0x70] sm:$0xff]
    %v116 = vld [vmem:[%s2 + $0x78] sm:$0xff]
    %v117 = vld [vmem:[#allocation6] sm:$0xff]
    %v118 = vld [vmem:[#allocation6 + $0x8] sm:$0xff]
    %v119 = vld [vmem:[#allocation6 + $0x10] sm:$0xff]
    %v120 = vld [vmem:[#allocation6 + $0x18] sm:$0xff]
    %v121 = vld [vmem:[#allocation6 + $0x20] sm:$0xff]
    %v122 = vld [vmem:[#allocation6 + $0x28] sm:$0xff]
    %v123 = vld [vmem:[#allocation6 + $0x30] sm:$0xff]
    %v124 = vld [vmem:[#allocation6 + $0x38] sm:$0xff]
    %v125 = vld [vmem:[#allocation6 + $0x40] sm:$0xff]
    %v126 = vld [vmem:[#allocation6 + $0x48] sm:$0xff]
    %v127 = vld [vmem:[#allocation6 + $0x50] sm:$0xff]
    %v128 = vld [vmem:[#allocation6 + $0x58] sm:$0xff]
    %v129 = vld [vmem:[#allocation6 + $0x60] sm:$0xff]
    %v130 = vld [vmem:[#allocation6 + $0x68] sm:$0xff]
    %v131 = vld [vmem:[#allocation6 + $0x70] sm:$0xff]
    %v132 = vld [vmem:[#allocation6 + $0x78] sm:$0xff]
    %v133 = vld [vmem:[#allocation6 + $0x80] sm:$0xff]
    %v134 = vld [vmem:[#allocation6 + $0x88] sm:$0xff]
    %v135 = vld [vmem:[#allocation6 + $0x90] sm:$0xff]
    %v136 = vld [vmem:[#allocation6 + $0x98] sm:$0xff]
    %v137 = vld [vmem:[#allocation6 + $0xa0] sm:$0xff]
    %v138 = vld [vmem:[#allocation6 + $0xa8] sm:$0xff]
    %v139 = vld [vmem:[#allocation6 + $0xb0] sm:$0xff]
    %v140 = vld [vmem:[#allocation6 + $0xb8] sm:$0xff]
    %v141 = vld [vmem:[#allocation6 + $0xc0] sm:$0xff]
    %v142 = vld [vmem:[#allocation6 + $0xc8] sm:$0xff]
    %v143 = vld [vmem:[#allocation6 + $0xd0] sm:$0xff]
    %v144 = vld [vmem:[#allocation6 + $0xd8] sm:$0xff]
    %v145 = vld [vmem:[#allocation6 + $0xe0] sm:$0xff]
    %v146 = vld [vmem:[#allocation6 + $0xe8] sm:$0xff]
    %v147 = vld [vmem:[#allocation6 + $0xf0] sm:$0xff]
    %v148 = vld [vmem:[#allocation6 + $0xf8] sm:$0xff]
    %v157 = vunpack.c.l.b16 %v101
    %v158 = vunpack.c.h.b16 %v101
    %v159 = vunpack.c.l.b16 %v102
    %v160 = vunpack.c.h.b16 %v102
    %v161 = vunpack.c.l.b16 %v103
    %v162 = vunpack.c.h.b16 %v103
    %v163 = vunpack.c.l.b16 %v104
    %v164 = vunpack.c.h.b16 %v104
    %v165 = vunpack.c.l.b16 %v105
    %v166 = vunpack.c.h.b16 %v105
    %v167 = vunpack.c.l.b16 %v106
    %v168 = vunpack.c.h.b16 %v106
    %v169 = vunpack.c.l.b16 %v107
    %v170 = vunpack.c.h.b16 %v107
    %v171 = vunpack.c.l.b16 %v108
    %v172 = vunpack.c.h.b16 %v108
    %v173 = vpack.c.b16 %v159, %v157
    %v174 = vpack.c.b16 %v160, %v158
    %v175 = vpack.c.b16 %v163, %v161
    %v176 = vpack.c.b16 %v164, %v162
    %v177 = vpack.c.b16 %v167, %v165
    %v178 = vpack.c.b16 %v168, %v166
    %v179 = vpack.c.b16 %v171, %v169
    %v180 = vpack.c.b16 %v172, %v170
    %v221 = vunpack.c.l.b16 %v117
    %v222 = vunpack.c.h.b16 %v117
    %v223 = vunpack.c.l.b16 %v118
    %v224 = vunpack.c.h.b16 %v118
    %v225 = vunpack.c.l.b16 %v119
    %v226 = vunpack.c.h.b16 %v119
    %v227 = vunpack.c.l.b16 %v120
    %v228 = vunpack.c.h.b16 %v120
    %v229 = vunpack.c.l.b16 %v121
    %v230 = vunpack.c.h.b16 %v121
    %v231 = vunpack.c.l.b16 %v122
    %v232 = vunpack.c.h.b16 %v122
    %v233 = vunpack.c.l.b16 %v123
    %v234 = vunpack.c.h.b16 %v123
    %v235 = vunpack.c.l.b16 %v124
    %v236 = vunpack.c.h.b16 %v124
    %v237 = vunpack.c.l.b16 %v125
    %v238 = vunpack.c.h.b16 %v125
    %v239 = vunpack.c.l.b16 %v126
    %v240 = vunpack.c.h.b16 %v126
    %v241 = vunpack.c.l.b16 %v127
    %v242 = vunpack.c.h.b16 %v127
    %v243 = vunpack.c.l.b16 %v128
    %v244 = vunpack.c.h.b16 %v128
    %v245 = vunpack.c.l.b16 %v129
    %v246 = vunpack.c.h.b16 %v129
    %v247 = vunpack.c.l.b16 %v130
    %v248 = vunpack.c.h.b16 %v130
    %v249 = vunpack.c.l.b16 %v131
    %v250 = vunpack.c.h.b16 %v131
    %v251 = vunpack.c.l.b16 %v132
    %v252 = vunpack.c.h.b16 %v132
    %v253 = vunpack.c.l.b16 %v133
    %v254 = vunpack.c.h.b16 %v133
    %v255 = vunpack.c.l.b16 %v134
    %v256 = vunpack.c.h.b16 %v134
    %v257 = vunpack.c.l.b16 %v135
    %v258 = vunpack.c.h.b16 %v135
    %v259 = vunpack.c.l.b16 %v136
    %v260 = vunpack.c.h.b16 %v136
    %v261 = vunpack.c.l.b16 %v137
    %v262 = vunpack.c.h.b16 %v137
    %v263 = vunpack.c.l.b16 %v138
    %v264 = vunpack.c.h.b16 %v138
    %v265 = vunpack.c.l.b16 %v139
    %v266 = vunpack.c.h.b16 %v139
    %v267 = vunpack.c.l.b16 %v140
    %v268 = vunpack.c.h.b16 %v140
    %v269 = vunpack.c.l.b16 %v141
    %v270 = vunpack.c.h.b16 %v141
    %v271 = vunpack.c.l.b16 %v142
    %v272 = vunpack.c.h.b16 %v142
    %v273 = vunpack.c.l.b16 %v143
    %v274 = vunpack.c.h.b16 %v143
    %v275 = vunpack.c.l.b16 %v144
    %v276 = vunpack.c.h.b16 %v144
    %v277 = vunpack.c.l.b16 %v145
    %v278 = vunpack.c.h.b16 %v145
    %v279 = vunpack.c.l.b16 %v146
    %v280 = vunpack.c.h.b16 %v146
    %v281 = vunpack.c.l.b16 %v147
    %v282 = vunpack.c.h.b16 %v147
    %v283 = vunpack.c.l.b16 %v148
    %v284 = vunpack.c.h.b16 %v148
    %v285 = vpack.c.b16 %v223, %v221
    %v286 = vpack.c.b16 %v224, %v222
    %v287 = vpack.c.b16 %v227, %v225
    %v288 = vpack.c.b16 %v228, %v226
    %v289 = vpack.c.b16 %v231, %v229
    %v290 = vpack.c.b16 %v232, %v230
    %v291 = vpack.c.b16 %v235, %v233
    %v292 = vpack.c.b16 %v236, %v234
    %v293 = vpack.c.b16 %v239, %v237
    %v294 = vpack.c.b16 %v240, %v238
    %v295 = vpack.c.b16 %v243, %v241
    %v296 = vpack.c.b16 %v244, %v242
    %v297 = vpack.c.b16 %v247, %v245
    %v298 = vpack.c.b16 %v248, %v246
    %v299 = vpack.c.b16 %v251, %v249
    %v300 = vpack.c.b16 %v252, %v250
    %v301 = vpack.c.b16 %v255, %v253
    %v302 = vpack.c.b16 %v256, %v254
    %v303 = vpack.c.b16 %v259, %v257
    %v304 = vpack.c.b16 %v260, %v258
    %v305 = vpack.c.b16 %v263, %v261
    %v306 = vpack.c.b16 %v264, %v262
    %v307 = vpack.c.b16 %v267, %v265
    %v308 = vpack.c.b16 %v268, %v266
    %v309 = vpack.c.b16 %v271, %v269
    %v310 = vpack.c.b16 %v272, %v270
    %v311 = vpack.c.b16 %v275, %v273
    %v312 = vpack.c.b16 %v276, %v274
    %v313 = vpack.c.b16 %v279, %v277
    %v314 = vpack.c.b16 %v280, %v278
    %v315 = vpack.c.b16 %v283, %v281
    %v316 = vpack.c.b16 %v284, %v282
    %349 = vmatprep.subr.bf16.mxu0 %v286
    %350 = vmatpush1.bf16.msra.mxu0 %v285
    %351 = vmatprep.subr.bf16.mxu0 %v288
    %352 = vmatpush1.bf16.msra.mxu0 %v287
    %353 = vmatprep.subr.bf16.mxu0 %v290
    %354 = vmatpush1.bf16.msra.mxu0 %v289
    %355 = vmatprep.subr.bf16.mxu0 %v292
    %356 = vmatpush1.bf16.msra.mxu0 %v291
    %357 = vmatprep.subr.bf16.mxu0 %v294
    %358 = vmatpush1.bf16.msra.mxu0 %v293
    %359 = vmatprep.subr.bf16.mxu0 %v296
    %360 = vmatpush1.bf16.msra.mxu0 %v295
    %361 = vmatprep.subr.bf16.mxu0 %v298
    %362 = vmatpush1.bf16.msra.mxu0 %v297
    %363 = vmatprep.subr.bf16.mxu0 %v300
    %364 = vmatpush1.bf16.msra.mxu0 %v299
    %365 = vmatprep.subr.bf16.mxu0 %v302
    %366 = vmatpush1.bf16.msra.mxu0 %v301
    %367 = vmatprep.subr.bf16.mxu0 %v304
    %368 = vmatpush1.bf16.msra.mxu0 %v303
    %369 = vmatprep.subr.bf16.mxu0 %v306
    %370 = vmatpush1.bf16.msra.mxu0 %v305
    %371 = vmatprep.subr.bf16.mxu0 %v308
    %372 = vmatpush1.bf16.msra.mxu0 %v307
    %373 = vmatprep.subr.bf16.mxu0 %v310
    %374 = vmatpush1.bf16.msra.mxu0 %v309
    %375 = vmatprep.subr.bf16.mxu0 %v312
    %376 = vmatpush1.bf16.msra.mxu0 %v311
    %377 = vmatprep.subr.bf16.mxu0 %v314
    %378 = vmatpush1.bf16.msra.mxu0 %v313
    %379 = vmatprep.subr.bf16.mxu0 %v316
    %380 = vmatpush1.bf16.msra.mxu0 %v315
    %381 = vmatprep.mubr.bf16.mxu0 %v174
    %382 = vmatmul.mubr.bf16.gmra.mrb[0].mxu0 %v173
    %v383 = vpop.f32.mrb[0].mxu0
    %v384 = vadd.f32 0.0, %v383
    %v385 = vpop.f32.mrb[0].mxu0
    %v386 = vadd.f32 0.0, %v385
    %v387 = vpop.f32.mrb[0].mxu0
    %v388 = vadd.f32 0.0, %v387
    %v389 = vpop.f32.mrb[0].mxu0
    %v390 = vadd.f32 0.0, %v389
    %391 = vmatprep.mubr.bf16.mxu0 %v176
    %392 = vmatmul.mubr.bf16.gmra.mrb[0].mxu0 %v175
    %v393 = vpop.f32.mrb[0].mxu0
    %v394 = vadd.f32 0.0, %v393
    %v395 = vpop.f32.mrb[0].mxu0
    %v396 = vadd.f32 0.0, %v395
    %v397 = vpop.f32.mrb[0].mxu0
    %v398 = vadd.f32 0.0, %v397
    %v399 = vpop.f32.mrb[0].mxu0
    %v400 = vadd.f32 0.0, %v399
    %401 = vmatprep.mubr.bf16.mxu0 %v178
    %402 = vmatmul.mubr.bf16.gmra.mrb[0].mxu0 %v177
    %v403 = vpop.f32.mrb[0].mxu0
    %v404 = vadd.f32 0.0, %v403
    %v405 = vpop.f32.mrb[0].mxu0
    %v406 = vadd.f32 0.0, %v405
    %v407 = vpop.f32.mrb[0].mxu0
    %v408 = vadd.f32 0.0, %v407
    %v409 = vpop.f32.mrb[0].mxu0
    %v410 = vadd.f32 0.0, %v409
    %411 = vmatprep.mubr.bf16.mxu0 %v180
    %412 = vmatmul.mubr.bf16.gmra.mrb[0].mxu0 %v179
    %v413 = vpop.f32.mrb[0].mxu0
    %v414 = vadd.f32 0.0, %v413
    %v415 = vpop.f32.mrb[0].mxu0
    %v416 = vadd.f32 0.0, %v415
    %v417 = vpop.f32.mrb[0].mxu0
    %v418 = vadd.f32 0.0, %v417
    %v419 = vpop.f32.mrb[0].mxu0
    %v420 = vadd.f32 0.0, %v419
    %421 = vdwg.mxu0
    %s422 = scalar_lea.vmem [#allocation6], 256
    %v423 = vld [vmem:[%s422] sm:$0xff]
    %v424 = vld [vmem:[%s422 + $0x8] sm:$0xff]
    %v425 = vld [vmem:[%s422 + $0x10] sm:$0xff]
    %v426 = vld [vmem:[%s422 + $0x18] sm:$0xff]
    %v427 = vld [vmem:[%s422 + $0x20] sm:$0xff]
    %v428 = vld [vmem:[%s422 + $0x28] sm:$0xff]
    %v429 = vld [vmem:[%s422 + $0x30] sm:$0xff]
    %v430 = vld [vmem:[%s422 + $0x38] sm:$0xff]
    %v431 = vld [vmem:[%s422 + $0x40] sm:$0xff]
    %v432 = vld [vmem:[%s422 + $0x48] sm:$0xff]
    %v433 = vld [vmem:[%s422 + $0x50] sm:$0xff]
    %v434 = vld [vmem:[%s422 + $0x58] sm:$0xff]
    %v435 = vld [vmem:[%s422 + $0x60] sm:$0xff]
    %v436 = vld [vmem:[%s422 + $0x68] sm:$0xff]
    %v437 = vld [vmem:[%s422 + $0x70] sm:$0xff]
    %v438 = vld [vmem:[%s422 + $0x78] sm:$0xff]
    %v439 = vld [vmem:[%s422 + $0x80] sm:$0xff]
    %v440 = vld [vmem:[%s422 + $0x88] sm:$0xff]
    %v441 = vld [vmem:[%s422 + $0x90] sm:$0xff]
    %v442 = vld [vmem:[%s422 + $0x98] sm:$0xff]
    %v443 = vld [vmem:[%s422 + $0xa0] sm:$0xff]
    %v444 = vld [vmem:[%s422 + $0xa8] sm:$0xff]
    %v445 = vld [vmem:[%s422 + $0xb0] sm:$0xff]
    %v446 = vld [vmem:[%s422 + $0xb8] sm:$0xff]
    %v447 = vld [vmem:[%s422 + $0xc0] sm:$0xff]
    %v448 = vld [vmem:[%s422 + $0xc8] sm:$0xff]
    %v449 = vld [vmem:[%s422 + $0xd0] sm:$0xff]
    %v450 = vld [vmem:[%s422 + $0xd8] sm:$0xff]
    %v451 = vld [vmem:[%s422 + $0xe0] sm:$0xff]
    %v452 = vld [vmem:[%s422 + $0xe8] sm:$0xff]
    %v453 = vld [vmem:[%s422 + $0xf0] sm:$0xff]
    %v454 = vld [vmem:[%s422 + $0xf8] sm:$0xff]
    %v463 = vunpack.c.l.b16 %v109
    %v464 = vunpack.c.h.b16 %v109
    %v465 = vunpack.c.l.b16 %v110
    %v466 = vunpack.c.h.b16 %v110
    %v467 = vunpack.c.l.b16 %v111
    %v468 = vunpack.c.h.b16 %v111
    %v469 = vunpack.c.l.b16 %v112
    %v470 = vunpack.c.h.b16 %v112
    %v471 = vunpack.c.l.b16 %v113
    %v472 = vunpack.c.h.b16 %v113
    %v473 = vunpack.c.l.b16 %v114
    %v474 = vunpack.c.h.b16 %v114
    %v475 = vunpack.c.l.b16 %v115
    %v476 = vunpack.c.h.b16 %v115
    %v477 = vunpack.c.l.b16 %v116
    %v478 = vunpack.c.h.b16 %v116
    %v479 = vpack.c.b16 %v465, %v463
    %v480 = vpack.c.b16 %v466, %v464
    %v481 = vpack.c.b16 %v469, %v467
    %v482 = vpack.c.b16 %v470, %v468
    %v483 = vpack.c.b16 %v473, %v471
    %v484 = vpack.c.b16 %v474, %v472
    %v485 = vpack.c.b16 %v477, %v475
    %v486 = vpack.c.b16 %v478, %v476
    %v527 = vunpack.c.l.b16 %v423
    %v528 = vunpack.c.h.b16 %v423
    %v529 = vunpack.c.l.b16 %v424
    %v530 = vunpack.c.h.b16 %v424
    %v531 = vunpack.c.l.b16 %v425
    %v532 = vunpack.c.h.b16 %v425
    %v533 = vunpack.c.l.b16 %v426
    %v534 = vunpack.c.h.b16 %v426
    %v535 = vunpack.c.l.b16 %v427
    %v536 = vunpack.c.h.b16 %v427
    %v537 = vunpack.c.l.b16 %v428
    %v538 = vunpack.c.h.b16 %v428
    %v539 = vunpack.c.l.b16 %v429
    %v540 = vunpack.c.h.b16 %v429
    %v541 = vunpack.c.l.b16 %v430
    %v542 = vunpack.c.h.b16 %v430
    %v543 = vunpack.c.l.b16 %v431
    %v544 = vunpack.c.h.b16 %v431
    %v545 = vunpack.c.l.b16 %v432
    %v546 = vunpack.c.h.b16 %v432
    %v547 = vunpack.c.l.b16 %v433
    %v548 = vunpack.c.h.b16 %v433
    %v549 = vunpack.c.l.b16 %v434
    %v550 = vunpack.c.h.b16 %v434
    %v551 = vunpack.c.l.b16 %v435
    %v552 = vunpack.c.h.b16 %v435
    %v553 = vunpack.c.l.b16 %v436
    %v554 = vunpack.c.h.b16 %v436
    %v555 = vunpack.c.l.b16 %v437
    %v556 = vunpack.c.h.b16 %v437
    %v557 = vunpack.c.l.b16 %v438
    %v558 = vunpack.c.h.b16 %v438
    %v559 = vunpack.c.l.b16 %v439
    %v560 = vunpack.c.h.b16 %v439
    %v561 = vunpack.c.l.b16 %v440
    %v562 = vunpack.c.h.b16 %v440
    %v563 = vunpack.c.l.b16 %v441
    %v564 = vunpack.c.h.b16 %v441
    %v565 = vunpack.c.l.b16 %v442
    %v566 = vunpack.c.h.b16 %v442
    %v567 = vunpack.c.l.b16 %v443
    %v568 = vunpack.c.h.b16 %v443
    %v569 = vunpack.c.l.b16 %v444
    %v570 = vunpack.c.h.b16 %v444
    %v571 = vunpack.c.l.b16 %v445
    %v572 = vunpack.c.h.b16 %v445
    %v573 = vunpack.c.l.b16 %v446
    %v574 = vunpack.c.h.b16 %v446
    %v575 = vunpack.c.l.b16 %v447
    %v576 = vunpack.c.h.b16 %v447
    %v577 = vunpack.c.l.b16 %v448
    %v578 = vunpack.c.h.b16 %v448
    %v579 = vunpack.c.l.b16 %v449
    %v580 = vunpack.c.h.b16 %v449
    %v581 = vunpack.c.l.b16 %v450
    %v582 = vunpack.c.h.b16 %v450
    %v583 = vunpack.c.l.b16 %v451
    %v584 = vunpack.c.h.b16 %v451
    %v585 = vunpack.c.l.b16 %v452
    %v586 = vunpack.c.h.b16 %v452
    %v587 = vunpack.c.l.b16 %v453
    %v588 = vunpack.c.h.b16 %v453
    %v589 = vunpack.c.l.b16 %v454
    %v590 = vunpack.c.h.b16 %v454
    %v591 = vpack.c.b16 %v529, %v527
    %v592 = vpack.c.b16 %v530, %v528
    %v593 = vpack.c.b16 %v533, %v531
    %v594 = vpack.c.b16 %v534, %v532
    %v595 = vpack.c.b16 %v537, %v535
    %v596 = vpack.c.b16 %v538, %v536
    %v597 = vpack.c.b16 %v541, %v539
    %v598 = vpack.c.b16 %v542, %v540
    %v599 = vpack.c.b16 %v545, %v543
    %v600 = vpack.c.b16 %v546, %v544
    %v601 = vpack.c.b16 %v549, %v547
    %v602 = vpack.c.b16 %v550, %v548
    %v603 = vpack.c.b16 %v553, %v551
    %v604 = vpack.c.b16 %v554, %v552
    %v605 = vpack.c.b16 %v557, %v555
    %v606 = vpack.c.b16 %v558, %v556
    %v607 = vpack.c.b16 %v561, %v559
    %v608 = vpack.c.b16 %v562, %v560
    %v609 = vpack.c.b16 %v565, %v563
    %v610 = vpack.c.b16 %v566, %v564
    %v611 = vpack.c.b16 %v569, %v567
    %v612 = vpack.c.b16 %v570, %v568
    %v613 = vpack.c.b16 %v573, %v571
    %v614 = vpack.c.b16 %v574, %v572
    %v615 = vpack.c.b16 %v577, %v575
    %v616 = vpack.c.b16 %v578, %v576
    %v617 = vpack.c.b16 %v581, %v579
    %v618 = vpack.c.b16 %v582, %v580
    %v619 = vpack.c.b16 %v585, %v583
    %v620 = vpack.c.b16 %v586, %v584
    %v621 = vpack.c.b16 %v589, %v587
    %v622 = vpack.c.b16 %v590, %v588
    %655 = vmatprep.subr.bf16.mxu0 %v592
    %656 = vmatpush1.bf16.msra.mxu0 %v591
    %657 = vmatprep.subr.bf16.mxu0 %v594
    %658 = vmatpush1.bf16.msra.mxu0 %v593
    %659 = vmatprep.subr.bf16.mxu0 %v596
    %660 = vmatpush1.bf16.msra.mxu0 %v595
    %661 = vmatprep.subr.bf16.mxu0 %v598
    %662 = vmatpush1.bf16.msra.mxu0 %v597
    %663 = vmatprep.subr.bf16.mxu0 %v600
    %664 = vmatpush1.bf16.msra.mxu0 %v599
    %665 = vmatprep.subr.bf16.mxu0 %v602
    %666 = vmatpush1.bf16.msra.mxu0 %v601
    %667 = vmatprep.subr.bf16.mxu0 %v604
    %668 = vmatpush1.bf16.msra.mxu0 %v603
    %669 = vmatprep.subr.bf16.mxu0 %v606
    %670 = vmatpush1.bf16.msra.mxu0 %v605
    %671 = vmatprep.subr.bf16.mxu0 %v608
    %672 = vmatpush1.bf16.msra.mxu0 %v607
    %673 = vmatprep.subr.bf16.mxu0 %v610
    %674 = vmatpush1.bf16.msra.mxu0 %v609
    %675 = vmatprep.subr.bf16.mxu0 %v612
    %676 = vmatpush1.bf16.msra.mxu0 %v611
    %677 = vmatprep.subr.bf16.mxu0 %v614
    %678 = vmatpush1.bf16.msra.mxu0 %v613
    %679 = vmatprep.subr.bf16.mxu0 %v616
    %680 = vmatpush1.bf16.msra.mxu0 %v615
    %681 = vmatprep.subr.bf16.mxu0 %v618
    %682 = vmatpush1.bf16.msra.mxu0 %v617
    %683 = vmatprep.subr.bf16.mxu0 %v620
    %684 = vmatpush1.bf16.msra.mxu0 %v619
    %685 = vmatprep.subr.bf16.mxu0 %v622
    %686 = vmatpush1.bf16.msra.mxu0 %v621
    %687 = vmatprep.mubr.bf16.mxu0 %v480
    %688 = vmatmul.mubr.bf16.gmra.mrb[0].mxu0 %v479
    %v689 = vpop.f32.mrb[0].mxu0
    %v690 = vadd.f32 0.0, %v689
    %v691 = vpop.f32.mrb[0].mxu0
    %v692 = vadd.f32 0.0, %v691
    %v693 = vpop.f32.mrb[0].mxu0
    %v694 = vadd.f32 0.0, %v693
    %v695 = vpop.f32.mrb[0].mxu0
    %v696 = vadd.f32 0.0, %v695
    %697 = vmatprep.mubr.bf16.mxu0 %v482
    %698 = vmatmul.mubr.bf16.gmra.mrb[0].mxu0 %v481
    %v699 = vpop.f32.mrb[0].mxu0
    %v700 = vadd.f32 0.0, %v699
    %v701 = vpop.f32.mrb[0].mxu0
    %v702 = vadd.f32 0.0, %v701
    %v703 = vpop.f32.mrb[0].mxu0
    %v704 = vadd.f32 0.0, %v703
    %v705 = vpop.f32.mrb[0].mxu0
    %v706 = vadd.f32 0.0, %v705
    %707 = vmatprep.mubr.bf16.mxu0 %v484
    %708 = vmatmul.mubr.bf16.gmra.mrb[0].mxu0 %v483
    %v709 = vpop.f32.mrb[0].mxu0
    %v710 = vadd.f32 0.0, %v709
    %v711 = vpop.f32.mrb[0].mxu0
    %v712 = vadd.f32 0.0, %v711
    %v713 = vpop.f32.mrb[0].mxu0
    %v714 = vadd.f32 0.0, %v713
    %v715 = vpop.f32.mrb[0].mxu0
    %v716 = vadd.f32 0.0, %v715
    %717 = vmatprep.mubr.bf16.mxu0 %v486
    %718 = vmatmul.mubr.bf16.gmra.mrb[0].mxu0 %v485
    %v719 = vpop.f32.mrb[0].mxu0
    %v720 = vadd.f32 0.0, %v719
    %v721 = vpop.f32.mrb[0].mxu0
    %v722 = vadd.f32 0.0, %v721
    %v723 = vpop.f32.mrb[0].mxu0
    %v724 = vadd.f32 0.0, %v723
    %v725 = vpop.f32.mrb[0].mxu0
    %v726 = vadd.f32 0.0, %v725
    %727 = vdwg.mxu0
    %v728 = vpack.c.bf16 %v388, %v384
    %v729 = vpack.c.bf16 %v390, %v386
    %v730 = vpack.c.bf16 %v398, %v394
    %v731 = vpack.c.bf16 %v400, %v396
    %v732 = vpack.c.bf16 %v408, %v404
    %v733 = vpack.c.bf16 %v410, %v406
    %v734 = vpack.c.bf16 %v418, %v414
    %v735 = vpack.c.bf16 %v420, %v416
    %v736 = vpack.c.bf16 %v694, %v690
    %v737 = vpack.c.bf16 %v696, %v692
    %v738 = vpack.c.bf16 %v704, %v700
    %v739 = vpack.c.bf16 %v706, %v702
    %v740 = vpack.c.bf16 %v714, %v710
    %v741 = vpack.c.bf16 %v716, %v712
    %v742 = vpack.c.bf16 %v724, %v720
    %v743 = vpack.c.bf16 %v726, %v722
    %v744 = vld [vmem:[%s4] ss:$8 sm:$0x3]
    %s745 = scalar_lea.vmem %s4, 1
    %v746 = vld [vmem:[%s745] ss:$8 sm:$0x3]
    %v748 = vlaneseq
    %v749 = vshrl.u32 %v748, 7
    %v750 = vsub.s32 0, %v749
    %v751 = vrot.slane %v744, %v750
    %v752 = vlaneseq
    %v753 = vshrl.u32 %v752, 7
    %v754 = vsub.s32 1, %v753
    %v755 = vrot.slane %v744, %v754
    %v759 = vlaneseq
    %v760 = vshrl.u32 %v759, 7
    %v761 = vsub.s32 0, %v760
    %v762 = vrot.slane %v746, %v761
    %v763 = vlaneseq
    %v764 = vshrl.u32 %v763, 7
    %v765 = vsub.s32 1, %v764
    %v766 = vrot.slane %v746, %v765
    %v769 = vsel %vm85, %v751, %v762
    %v770 = vsel %vm85, %v755, %v766
    %v771 = vsel %vm86, %v751, %v762
    %v772 = vsel %vm86, %v755, %v766
    %v773 = vsel %vm87, %v751, %v762
    %v774 = vsel %vm87, %v755, %v766
    %v775 = vsel %vm88, %v751, %v762
    %v776 = vsel %vm88, %v755, %v766
    %v777 = vsel %vm89, %v751, %v762
    %v778 = vsel %vm89, %v755, %v766
    %v779 = vsel %vm90, %v751, %v762
    %v780 = vsel %vm90, %v755, %v766
    %v781 = vsel %vm91, %v751, %v762
    %v782 = vsel %vm91, %v755, %v766
    %v783 = vsel %vm92, %v751, %v762
    %v784 = vsel %vm92, %v755, %v766
    %v785 = vsel %vm93, %v751, %v762
    %v786 = vsel %vm93, %v755, %v766
    %v787 = vsel %vm94, %v751, %v762
    %v788 = vsel %vm94, %v755, %v766
    %v789 = vsel %vm95, %v751, %v762
    %v790 = vsel %vm95, %v755, %v766
    %v791 = vsel %vm96, %v751, %v762
    %v792 = vsel %vm96, %v755, %v766
    %v793 = vsel %vm97, %v751, %v762
    %v794 = vsel %vm97, %v755, %v766
    %v795 = vsel %vm98, %v751, %v762
    %v796 = vsel %vm98, %v755, %v766
    %v797 = vsel %vm99, %v751, %v762
    %v798 = vsel %vm99, %v755, %v766
    %v799 = vsel %vm100, %v751, %v762
    %v800 = vsel %vm100, %v755, %v766
    %v817 = vunpack.c.l.b16 %v52
    %v818 = vunpack.c.l.b16 %v53
    %v819 = vunpack.c.l.b16 %v54
    %v820 = vunpack.c.l.b16 %v55
    %v821 = vunpack.c.l.b16 %v56
    %v822 = vunpack.c.l.b16 %v57
    %v823 = vunpack.c.l.b16 %v58
    %v824 = vunpack.c.l.b16 %v59
    %v825 = vunpack.c.l.b16 %v60
    %v826 = vunpack.c.l.b16 %v61
    %v827 = vunpack.c.l.b16 %v62
    %v828 = vunpack.c.l.b16 %v63
    %v829 = vunpack.c.l.b16 %v64
    %v830 = vunpack.c.l.b16 %v65
    %v831 = vunpack.c.l.b16 %v66
    %v832 = vunpack.c.l.b16 %v67
    %v833 = vpack.c.b16 %v818, %v817
    %v834 = vpack.c.b16 %v820, %v819
    %v835 = vpack.c.b16 %v822, %v821
    %v836 = vpack.c.b16 %v824, %v823
    %v837 = vpack.c.b16 %v826, %v825
    %v838 = vpack.c.b16 %v828, %v827
    %v839 = vpack.c.b16 %v830, %v829
    %v840 = vpack.c.b16 %v832, %v831
    %849 = vmatprep.subr.bf16.mxu0 %v729
    %850 = vmatpush1.bf16.msra.mxu0 %v728
    %851 = vmatprep.subr.bf16.mxu0 %v731
    %852 = vmatpush1.bf16.msra.mxu0 %v730
    %853 = vmatprep.subr.bf16.mxu0 %v733
    %854 = vmatpush1.bf16.msra.mxu0 %v732
    %855 = vmatprep.subr.bf16.mxu0 %v735
    %856 = vmatpush1.bf16.msra.mxu0 %v734
    %857 = vmatprep.subr.bf16.mxu0 %v737
    %858 = vmatpush1.bf16.msra.mxu0 %v736
    %859 = vmatprep.subr.bf16.mxu0 %v739
    %860 = vmatpush1.bf16.msra.mxu0 %v738
    %861 = vmatprep.subr.bf16.mxu0 %v741
    %862 = vmatpush1.bf16.msra.mxu0 %v740
    %863 = vmatprep.subr.bf16.mxu0 %v743
    %864 = vmatpush1.bf16.msra.mxu0 %v742
    %865 = vmatprep.subr.bf16.mxu0 0
    %866 = vmatpush1.bf16.msra.mxu0 0
    %867 = vmatprep.subr.bf16.mxu0 0
    %868 = vmatpush1.bf16.msra.mxu0 0
    %869 = vmatprep.subr.bf16.mxu0 0
    %870 = vmatpush1.bf16.msra.mxu0 0
    %871 = vmatprep.subr.bf16.mxu0 0
    %872 = vmatpush1.bf16.msra.mxu0 0
    %873 = vmatprep.subr.bf16.mxu0 0
    %874 = vmatpush1.bf16.msra.mxu0 0
    %875 = vmatprep.subr.bf16.mxu0 0
    %876 = vmatpush1.bf16.msra.mxu0 0
    %877 = vmatprep.subr.bf16.mxu0 0
    %878 = vmatpush1.bf16.msra.mxu0 0
    %879 = vmatprep.subr.bf16.mxu0 0
    %880 = vmatpush1.bf16.msra.mxu0 0
    %881 = vmatprep.mubr.bf16.mxu0 0
    %882 = vmatmul.mubr.bf16.gmra.mrb[0].mxu0 %v833
    %v883 = vpop.f32.mrb[0].mxu0
    %v884 = vadd.f32 %v769, %v883
    %v885 = vpop.f32.mrb[0].mxu0
    %v886 = vadd.f32 %v770, %v885
    %v887 = vpop.f32.mrb[0].mxu0
    %v888 = vadd.f32 %v771, %v887
    %v889 = vpop.f32.mrb[0].mxu0
    %v890 = vadd.f32 %v772, %v889
    %891 = vmatprep.mubr.bf16.mxu0 0
    %892 = vmatmul.mubr.bf16.gmra.mrb[0].mxu0 %v834
    %v893 = vpop.f32.mrb[0].mxu0
    %v894 = vadd.f32 %v773, %v893
    %v895 = vpop.f32.mrb[0].mxu0
    %v896 = vadd.f32 %v774, %v895
    %v897 = vpop.f32.mrb[0].mxu0
    %v898 = vadd.f32 %v775, %v897
    %v899 = vpop.f32.mrb[0].mxu0
    %v900 = vadd.f32 %v776, %v899
    %901 = vmatprep.mubr.bf16.mxu0 0
    %902 = vmatmul.mubr.bf16.gmra.mrb[0].mxu0 %v835
    %v903 = vpop.f32.mrb[0].mxu0
    %v904 = vadd.f32 %v777, %v903
    %v905 = vpop.f32.mrb[0].mxu0
    %v906 = vadd.f32 %v778, %v905
    %v907 = vpop.f32.mrb[0].mxu0
    %v908 = vadd.f32 %v779, %v907
    %v909 = vpop.f32.mrb[0].mxu0
    %v910 = vadd.f32 %v780, %v909
    %911 = vmatprep.mubr.bf16.mxu0 0
    %912 = vmatmul.mubr.bf16.gmra.mrb[0].mxu0 %v836
    %v913 = vpop.f32.mrb[0].mxu0
    %v914 = vadd.f32 %v781, %v913
    %v915 = vpop.f32.mrb[0].mxu0
    %v916 = vadd.f32 %v782, %v915
    %v917 = vpop.f32.mrb[0].mxu0
    %v918 = vadd.f32 %v783, %v917
    %v919 = vpop.f32.mrb[0].mxu0
    %v920 = vadd.f32 %v784, %v919
    %921 = vmatprep.mubr.bf16.mxu0 0
    %922 = vmatmul.mubr.bf16.gmra.mrb[0].mxu0 %v837
    %v923 = vpop.f32.mrb[0].mxu0
    %v924 = vadd.f32 %v785, %v923
    %v925 = vpop.f32.mrb[0].mxu0
    %v926 = vadd.f32 %v786, %v925
    %v927 = vpop.f32.mrb[0].mxu0
    %v928 = vadd.f32 %v787, %v927
    %v929 = vpop.f32.mrb[0].mxu0
    %v930 = vadd.f32 %v788, %v929
    %931 = vmatprep.mubr.bf16.mxu0 0
    %932 = vmatmul.mubr.bf16.gmra.mrb[0].mxu0 %v838
    %v933 = vpop.f32.mrb[0].mxu0
    %v934 = vadd.f32 %v789, %v933
    %v935 = vpop.f32.mrb[0].mxu0
    %v936 = vadd.f32 %v790, %v935
    %v937 = vpop.f32.mrb[0].mxu0
    %v938 = vadd.f32 %v791, %v937
    %v939 = vpop.f32.mrb[0].mxu0
    %v940 = vadd.f32 %v792, %v939
    %941 = vmatprep.mubr.bf16.mxu0 0
    %942 = vmatmul.mubr.bf16.gmra.mrb[0].mxu0 %v839
    %v943 = vpop.f32.mrb[0].mxu0
    %v944 = vadd.f32 %v793, %v943
    %v945 = vpop.f32.mrb[0].mxu0
    %v946 = vadd.f32 %v794, %v945
    %v947 = vpop.f32.mrb[0].mxu0
    %v948 = vadd.f32 %v795, %v947
    %v949 = vpop.f32.mrb[0].mxu0
    %v950 = vadd.f32 %v796, %v949
    %951 = vmatprep.mubr.bf16.mxu0 0
    %952 = vmatmul.mubr.bf16.gmra.mrb[0].mxu0 %v840
    %v953 = vpop.f32.mrb[0].mxu0
    %v954 = vadd.f32 %v797, %v953
    %v955 = vpop.f32.mrb[0].mxu0
    %v956 = vadd.f32 %v798, %v955
    %v957 = vpop.f32.mrb[0].mxu0
    %v958 = vadd.f32 %v799, %v957
    %v959 = vpop.f32.mrb[0].mxu0
    %v960 = vadd.f32 %v800, %v959
    %961 = vdwg.mxu0
    %s962 = sld [smem:[#allocation2]]
    %s963 = sld [smem:[#allocation2 + $0x2]]
    %v964 = vstv %s962
    %v965 = vstv %s963
    %v966 = vsel %vm85, %v964, %v965
    %v967 = vsel %vm86, %v964, %v965
    %v968 = vsel %vm87, %v964, %v965
    %v969 = vsel %vm88, %v964, %v965
    %v970 = vsel %vm89, %v964, %v965
    %v971 = vsel %vm90, %v964, %v965
    %v972 = vsel %vm91, %v964, %v965
    %v973 = vsel %vm92, %v964, %v965
    %v974 = vsel %vm93, %v964, %v965
    %v975 = vsel %vm94, %v964, %v965
    %v976 = vsel %vm95, %v964, %v965
    %v977 = vsel %vm96, %v964, %v965
    %v978 = vsel %vm97, %v964, %v965
    %v979 = vsel %vm98, %v964, %v965
    %v980 = vsel %vm99, %v964, %v965
    %v981 = vsel %vm100, %v964, %v965
    %vm982 = vcmp.ge.f32.partialorder %v884, 0.0
    %vm983 = vcmp.ge.f32.partialorder %v886, 0.0
    %vm984 = vcmp.ge.f32.partialorder %v888, 0.0
    %vm985 = vcmp.ge.f32.partialorder %v890, 0.0
    %vm986 = vcmp.ge.f32.partialorder %v894, 0.0
    %vm987 = vcmp.ge.f32.partialorder %v896, 0.0
    %vm988 = vcmp.ge.f32.partialorder %v898, 0.0
    %vm989 = vcmp.ge.f32.partialorder %v900, 0.0
    %vm990 = vcmp.ge.f32.partialorder %v904, 0.0
    %vm991 = vcmp.ge.f32.partialorder %v906, 0.0
    %vm992 = vcmp.ge.f32.partialorder %v908, 0.0
    %vm993 = vcmp.ge.f32.partialorder %v910, 0.0
    %vm994 = vcmp.ge.f32.partialorder %v914, 0.0
    %vm995 = vcmp.ge.f32.partialorder %v916, 0.0
    %vm996 = vcmp.ge.f32.partialorder %v918, 0.0
    %vm997 = vcmp.ge.f32.partialorder %v920, 0.0
    %vm998 = vcmp.ge.f32.partialorder %v924, 0.0
    %vm999 = vcmp.ge.f32.partialorder %v926, 0.0
    %vm1000 = vcmp.ge.f32.partialorder %v928, 0.0
    %vm1001 = vcmp.ge.f32.partialorder %v930, 0.0
    %vm1002 = vcmp.ge.f32.partialorder %v934, 0.0
    %vm1003 = vcmp.ge.f32.partialorder %v936, 0.0
    %vm1004 = vcmp.ge.f32.partialorder %v938, 0.0
    %vm1005 = vcmp.ge.f32.partialorder %v940, 0.0
    %vm1006 = vcmp.ge.f32.partialorder %v944, 0.0
    %vm1007 = vcmp.ge.f32.partialorder %v946, 0.0
    %vm1008 = vcmp.ge.f32.partialorder %v948, 0.0
    %vm1009 = vcmp.ge.f32.partialorder %v950, 0.0
    %vm1010 = vcmp.ge.f32.partialorder %v954, 0.0
    %vm1011 = vcmp.ge.f32.partialorder %v956, 0.0
    %vm1012 = vcmp.ge.f32.partialorder %v958, 0.0
    %vm1013 = vcmp.ge.f32.partialorder %v960, 0.0
    %v1014 = vmul.f32 %v966, %v884
    %v1015 = vmul.f32 %v966, %v886
    %v1016 = vmul.f32 %v967, %v888
    %v1017 = vmul.f32 %v967, %v890
    %v1018 = vmul.f32 %v968, %v894
    %v1019 = vmul.f32 %v968, %v896
    %v1020 = vmul.f32 %v969, %v898
    %v1021 = vmul.f32 %v969, %v900
    %v1022 = vmul.f32 %v970, %v904
    %v1023 = vmul.f32 %v970, %v906
    %v1024 = vmul.f32 %v971, %v908
    %v1025 = vmul.f32 %v971, %v910
    %v1026 = vmul.f32 %v972, %v914
    %v1027 = vmul.f32 %v972, %v916
    %v1028 = vmul.f32 %v973, %v918
    %v1029 = vmul.f32 %v973, %v920
    %v1030 = vmul.f32 %v974, %v924
    %v1031 = vmul.f32 %v974, %v926
    %v1032 = vmul.f32 %v975, %v928
    %v1033 = vmul.f32 %v975, %v930
    %v1034 = vmul.f32 %v976, %v934
    %v1035 = vmul.f32 %v976, %v936
    %v1036 = vmul.f32 %v977, %v938
    %v1037 = vmul.f32 %v977, %v940
    %v1038 = vmul.f32 %v978, %v944
    %v1039 = vmul.f32 %v978, %v946
    %v1040 = vmul.f32 %v979, %v948
    %v1041 = vmul.f32 %v979, %v950
    %v1042 = vmul.f32 %v980, %v954
    %v1043 = vmul.f32 %v980, %v956
    %v1044 = vmul.f32 %v981, %v958
    %v1045 = vmul.f32 %v981, %v960
    %v1046 = vsel %vm982, %v884, %v1014
    %v1047 = vsel %vm983, %v886, %v1015
    %v1048 = vsel %vm984, %v888, %v1016
    %v1049 = vsel %vm985, %v890, %v1017
    %v1050 = vsel %vm986, %v894, %v1018
    %v1051 = vsel %vm987, %v896, %v1019
    %v1052 = vsel %vm988, %v898, %v1020
    %v1053 = vsel %vm989, %v900, %v1021
    %v1054 = vsel %vm990, %v904, %v1022
    %v1055 = vsel %vm991, %v906, %v1023
    %v1056 = vsel %vm992, %v908, %v1024
    %v1057 = vsel %vm993, %v910, %v1025
    %v1058 = vsel %vm994, %v914, %v1026
    %v1059 = vsel %vm995, %v916, %v1027
    %v1060 = vsel %vm996, %v918, %v1028
    %v1061 = vsel %vm997, %v920, %v1029
    %v1062 = vsel %vm998, %v924, %v1030
    %v1063 = vsel %vm999, %v926, %v1031
    %v1064 = vsel %vm1000, %v928, %v1032
    %v1065 = vsel %vm1001, %v930, %v1033
    %v1066 = vsel %vm1002, %v934, %v1034
    %v1067 = vsel %vm1003, %v936, %v1035
    %v1068 = vsel %vm1004, %v938, %v1036
    %v1069 = vsel %vm1005, %v940, %v1037
    %v1070 = vsel %vm1006, %v944, %v1038
    %v1071 = vsel %vm1007, %v946, %v1039
    %v1072 = vsel %vm1008, %v948, %v1040
    %v1073 = vsel %vm1009, %v950, %v1041
    %v1074 = vsel %vm1010, %v954, %v1042
    %v1075 = vsel %vm1011, %v956, %v1043
    %v1076 = vsel %vm1012, %v958, %v1044
    %v1077 = vsel %vm1013, %v960, %v1045
    %v1078 = vpack.c.bf16 %v1048, %v1046
    %v1079 = vpack.c.bf16 %v1049, %v1047
    %v1080 = vpack.c.bf16 %v1052, %v1050
    %v1081 = vpack.c.bf16 %v1053, %v1051
    %v1082 = vpack.c.bf16 %v1056, %v1054
    %v1083 = vpack.c.bf16 %v1057, %v1055
    %v1084 = vpack.c.bf16 %v1060, %v1058
    %v1085 = vpack.c.bf16 %v1061, %v1059
    %v1086 = vpack.c.bf16 %v1064, %v1062
    %v1087 = vpack.c.bf16 %v1065, %v1063
    %v1088 = vpack.c.bf16 %v1068, %v1066
    %v1089 = vpack.c.bf16 %v1069, %v1067
    %v1090 = vpack.c.bf16 %v1072, %v1070
    %v1091 = vpack.c.bf16 %v1073, %v1071
    %v1092 = vpack.c.bf16 %v1076, %v1074
    %v1093 = vpack.c.bf16 %v1077, %v1075
    %s1094 = scalar_lea.vmem [#allocation6], 512
    %v1095 = vld [vmem:[%s1094] sm:$0xff]
    %v1096 = vld [vmem:[%s1094 + $0x8] sm:$0xff]
    %v1097 = vld [vmem:[%s1094 + $0x10] sm:$0xff]
    %v1098 = vld [vmem:[%s1094 + $0x18] sm:$0xff]
    %v1099 = vld [vmem:[%s1094 + $0x20] sm:$0xff]
    %v1100 = vld [vmem:[%s1094 + $0x28] sm:$0xff]
    %v1101 = vld [vmem:[%s1094 + $0x30] sm:$0xff]
    %v1102 = vld [vmem:[%s1094 + $0x38] sm:$0xff]
    %v1103 = vld [vmem:[%s1094 + $0x40] sm:$0xff]
    %v1104 = vld [vmem:[%s1094 + $0x48] sm:$0xff]
    %v1105 = vld [vmem:[%s1094 + $0x50] sm:$0xff]
    %v1106 = vld [vmem:[%s1094 + $0x58] sm:$0xff]
    %v1107 = vld [vmem:[%s1094 + $0x60] sm:$0xff]
    %v1108 = vld [vmem:[%s1094 + $0x68] sm:$0xff]
    %v1109 = vld [vmem:[%s1094 + $0x70] sm:$0xff]
    %v1110 = vld [vmem:[%s1094 + $0x78] sm:$0xff]
    %v1111 = vld [vmem:[%s1094 + $0x80] sm:$0xff]
    %v1112 = vld [vmem:[%s1094 + $0x88] sm:$0xff]
    %v1113 = vld [vmem:[%s1094 + $0x90] sm:$0xff]
    %v1114 = vld [vmem:[%s1094 + $0x98] sm:$0xff]
    %v1115 = vld [vmem:[%s1094 + $0xa0] sm:$0xff]
    %v1116 = vld [vmem:[%s1094 + $0xa8] sm:$0xff]
    %v1117 = vld [vmem:[%s1094 + $0xb0] sm:$0xff]
    %v1118 = vld [vmem:[%s1094 + $0xb8] sm:$0xff]
    %v1119 = vld [vmem:[%s1094 + $0xc0] sm:$0xff]
    %v1120 = vld [vmem:[%s1094 + $0xc8] sm:$0xff]
    %v1121 = vld [vmem:[%s1094 + $0xd0] sm:$0xff]
    %v1122 = vld [vmem:[%s1094 + $0xd8] sm:$0xff]
    %v1123 = vld [vmem:[%s1094 + $0xe0] sm:$0xff]
    %v1124 = vld [vmem:[%s1094 + $0xe8] sm:$0xff]
    %v1125 = vld [vmem:[%s1094 + $0xf0] sm:$0xff]
    %v1126 = vld [vmem:[%s1094 + $0xf8] sm:$0xff]
    %v1159 = vunpack.c.l.b16 %v1095
    %v1160 = vunpack.c.h.b16 %v1095
    %v1161 = vunpack.c.l.b16 %v1096
    %v1162 = vunpack.c.h.b16 %v1096
    %v1163 = vunpack.c.l.b16 %v1097
    %v1164 = vunpack.c.h.b16 %v1097
    %v1165 = vunpack.c.l.b16 %v1098
    %v1166 = vunpack.c.h.b16 %v1098
    %v1167 = vunpack.c.l.b16 %v1099
    %v1168 = vunpack.c.h.b16 %v1099
    %v1169 = vunpack.c.l.b16 %v1100
    %v1170 = vunpack.c.h.b16 %v1100
    %v1171 = vunpack.c.l.b16 %v1101
    %v1172 = vunpack.c.h.b16 %v1101
    %v1173 = vunpack.c.l.b16 %v1102
    %v1174 = vunpack.c.h.b16 %v1102
    %v1175 = vunpack.c.l.b16 %v1103
    %v1176 = vunpack.c.h.b16 %v1103
    %v1177 = vunpack.c.l.b16 %v1104
    %v1178 = vunpack.c.h.b16 %v1104
    %v1179 = vunpack.c.l.b16 %v1105
    %v1180 = vunpack.c.h.b16 %v1105
    %v1181 = vunpack.c.l.b16 %v1106
    %v1182 = vunpack.c.h.b16 %v1106
    %v1183 = vunpack.c.l.b16 %v1107
    %v1184 = vunpack.c.h.b16 %v1107
    %v1185 = vunpack.c.l.b16 %v1108
    %v1186 = vunpack.c.h.b16 %v1108
    %v1187 = vunpack.c.l.b16 %v1109
    %v1188 = vunpack.c.h.b16 %v1109
    %v1189 = vunpack.c.l.b16 %v1110
    %v1190 = vunpack.c.h.b16 %v1110
    %v1191 = vunpack.c.l.b16 %v1111
    %v1192 = vunpack.c.h.b16 %v1111
    %v1193 = vunpack.c.l.b16 %v1112
    %v1194 = vunpack.c.h.b16 %v1112
    %v1195 = vunpack.c.l.b16 %v1113
    %v1196 = vunpack.c.h.b16 %v1113
    %v1197 = vunpack.c.l.b16 %v1114
    %v1198 = vunpack.c.h.b16 %v1114
    %v1199 = vunpack.c.l.b16 %v1115
    %v1200 = vunpack.c.h.b16 %v1115
    %v1201 = vunpack.c.l.b16 %v1116
    %v1202 = vunpack.c.h.b16 %v1116
    %v1203 = vunpack.c.l.b16 %v1117
    %v1204 = vunpack.c.h.b16 %v1117
    %v1205 = vunpack.c.l.b16 %v1118
    %v1206 = vunpack.c.h.b16 %v1118
    %v1207 = vunpack.c.l.b16 %v1119
    %v1208 = vunpack.c.h.b16 %v1119
    %v1209 = vunpack.c.l.b16 %v1120
    %v1210 = vunpack.c.h.b16 %v1120
    %v1211 = vunpack.c.l.b16 %v1121
    %v1212 = vunpack.c.h.b16 %v1121
    %v1213 = vunpack.c.l.b16 %v1122
    %v1214 = vunpack.c.h.b16 %v1122
    %v1215 = vunpack.c.l.b16 %v1123
    %v1216 = vunpack.c.h.b16 %v1123
    %v1217 = vunpack.c.l.b16 %v1124
    %v1218 = vunpack.c.h.b16 %v1124
    %v1219 = vunpack.c.l.b16 %v1125
    %v1220 = vunpack.c.h.b16 %v1125
    %v1221 = vunpack.c.l.b16 %v1126
    %v1222 = vunpack.c.h.b16 %v1126
    %v1223 = vpack.c.b16 %v1161, %v1159
    %v1224 = vpack.c.b16 %v1162, %v1160
    %v1225 = vpack.c.b16 %v1165, %v1163
    %v1226 = vpack.c.b16 %v1166, %v1164
    %v1227 = vpack.c.b16 %v1169, %v1167
    %v1228 = vpack.c.b16 %v1170, %v1168
    %v1229 = vpack.c.b16 %v1173, %v1171
    %v1230 = vpack.c.b16 %v1174, %v1172
    %v1231 = vpack.c.b16 %v1177, %v1175
    %v1232 = vpack.c.b16 %v1178, %v1176
    %v1233 = vpack.c.b16 %v1181, %v1179
    %v1234 = vpack.c.b16 %v1182, %v1180
    %v1235 = vpack.c.b16 %v1185, %v1183
    %v1236 = vpack.c.b16 %v1186, %v1184
    %v1237 = vpack.c.b16 %v1189, %v1187
    %v1238 = vpack.c.b16 %v1190, %v1188
    %v1239 = vpack.c.b16 %v1193, %v1191
    %v1240 = vpack.c.b16 %v1194, %v1192
    %v1241 = vpack.c.b16 %v1197, %v1195
    %v1242 = vpack.c.b16 %v1198, %v1196
    %v1243 = vpack.c.b16 %v1201, %v1199
    %v1244 = vpack.c.b16 %v1202, %v1200
    %v1245 = vpack.c.b16 %v1205, %v1203
    %v1246 = vpack.c.b16 %v1206, %v1204
    %v1247 = vpack.c.b16 %v1209, %v1207
    %v1248 = vpack.c.b16 %v1210, %v1208
    %v1249 = vpack.c.b16 %v1213, %v1211
    %v1250 = vpack.c.b16 %v1214, %v1212
    %v1251 = vpack.c.b16 %v1217, %v1215
    %v1252 = vpack.c.b16 %v1218, %v1216
    %v1253 = vpack.c.b16 %v1221, %v1219
    %v1254 = vpack.c.b16 %v1222, %v1220
    %1287 = vmatprep.subr.bf16.mxu0 %v1224
    %1288 = vmatpush1.bf16.msra.mxu0 %v1223
    %1289 = vmatprep.subr.bf16.mxu0 %v1226
    %1290 = vmatpush1.bf16.msra.mxu0 %v1225
    %1291 = vmatprep.subr.bf16.mxu0 %v1228
    %1292 = vmatpush1.bf16.msra.mxu0 %v1227
    %1293 = vmatprep.subr.bf16.mxu0 %v1230
    %1294 = vmatpush1.bf16.msra.mxu0 %v1229
    %1295 = vmatprep.subr.bf16.mxu0 %v1232
    %1296 = vmatpush1.bf16.msra.mxu0 %v1231
    %1297 = vmatprep.subr.bf16.mxu0 %v1234
    %1298 = vmatpush1.bf16.msra.mxu0 %v1233
    %1299 = vmatprep.subr.bf16.mxu0 %v1236
    %1300 = vmatpush1.bf16.msra.mxu0 %v1235
    %1301 = vmatprep.subr.bf16.mxu0 %v1238
    %1302 = vmatpush1.bf16.msra.mxu0 %v1237
    %1303 = vmatprep.subr.bf16.mxu0 %v1240
    %1304 = vmatpush1.bf16.msra.mxu0 %v1239
    %1305 = vmatprep.subr.bf16.mxu0 %v1242
    %1306 = vmatpush1.bf16.msra.mxu0 %v1241
    %1307 = vmatprep.subr.bf16.mxu0 %v1244
    %1308 = vmatpush1.bf16.msra.mxu0 %v1243
    %1309 = vmatprep.subr.bf16.mxu0 %v1246
    %1310 = vmatpush1.bf16.msra.mxu0 %v1245
    %1311 = vmatprep.subr.bf16.mxu0 %v1248
    %1312 = vmatpush1.bf16.msra.mxu0 %v1247
    %1313 = vmatprep.subr.bf16.mxu0 %v1250
    %1314 = vmatpush1.bf16.msra.mxu0 %v1249
    %1315 = vmatprep.subr.bf16.mxu0 %v1252
    %1316 = vmatpush1.bf16.msra.mxu0 %v1251
    %1317 = vmatprep.subr.bf16.mxu0 %v1254
    %1318 = vmatpush1.bf16.msra.mxu0 %v1253
    %1319 = vmatprep.mubr.bf16.mxu0 %v1079
    %1320 = vmatmul.mubr.bf16.gmra.mrb[0].mxu0 %v1078
    %v1321 = vpop.f32.mrb[0].mxu0
    %v1322 = vadd.f32 0.0, %v1321
    %v1323 = vpop.f32.mrb[0].mxu0
    %v1324 = vadd.f32 0.0, %v1323
    %v1325 = vpop.f32.mrb[0].mxu0
    %v1326 = vadd.f32 0.0, %v1325
    %v1327 = vpop.f32.mrb[0].mxu0
    %v1328 = vadd.f32 0.0, %v1327
    %1329 = vmatprep.mubr.bf16.mxu0 %v1081
    %1330 = vmatmul.mubr.bf16.gmra.mrb[0].mxu0 %v1080
    %v1331 = vpop.f32.mrb[0].mxu0
    %v1332 = vadd.f32 0.0, %v1331
    %v1333 = vpop.f32.mrb[0].mxu0
    %v1334 = vadd.f32 0.0, %v1333
    %v1335 = vpop.f32.mrb[0].mxu0
    %v1336 = vadd.f32 0.0, %v1335
    %v1337 = vpop.f32.mrb[0].mxu0
    %v1338 = vadd.f32 0.0, %v1337
    %1339 = vmatprep.mubr.bf16.mxu0 %v1083
    %1340 = vmatmul.mubr.bf16.gmra.mrb[0].mxu0 %v1082
    %v1341 = vpop.f32.mrb[0].mxu0
    %v1342 = vadd.f32 0.0, %v1341
    %v1343 = vpop.f32.mrb[0].mxu0
    %v1344 = vadd.f32 0.0, %v1343
    %v1345 = vpop.f32.mrb[0].mxu0
    %v1346 = vadd.f32 0.0, %v1345
    %v1347 = vpop.f32.mrb[0].mxu0
    %v1348 = vadd.f32 0.0, %v1347
    %1349 = vmatprep.mubr.bf16.mxu0 %v1085
    %1350 = vmatmul.mubr.bf16.gmra.mrb[0].mxu0 %v1084
    %v1351 = vpop.f32.mrb[0].mxu0
    %v1352 = vadd.f32 0.0, %v1351
    %v1353 = vpop.f32.mrb[0].mxu0
    %v1354 = vadd.f32 0.0, %v1353
    %v1355 = vpop.f32.mrb[0].mxu0
    %v1356 = vadd.f32 0.0, %v1355
    %v1357 = vpop.f32.mrb[0].mxu0
    %v1358 = vadd.f32 0.0, %v1357
    %1359 = vdwg.mxu0
    %s1360 = scalar_lea.vmem [#allocation6], 768
    %v1361 = vld [vmem:[%s1360] sm:$0xff]
    %v1362 = vld [vmem:[%s1360 + $0x8] sm:$0xff]
    %v1363 = vld [vmem:[%s1360 + $0x10] sm:$0xff]
    %v1364 = vld [vmem:[%s1360 + $0x18] sm:$0xff]
    %v1365 = vld [vmem:[%s1360 + $0x20] sm:$0xff]
    %v1366 = vld [vmem:[%s1360 + $0x28] sm:$0xff]
    %v1367 = vld [vmem:[%s1360 + $0x30] sm:$0xff]
    %v1368 = vld [vmem:[%s1360 + $0x38] sm:$0xff]
    %v1369 = vld [vmem:[%s1360 + $0x40] sm:$0xff]
    %v1370 = vld [vmem:[%s1360 + $0x48] sm:$0xff]
    %v1371 = vld [vmem:[%s1360 + $0x50] sm:$0xff]
    %v1372 = vld [vmem:[%s1360 + $0x58] sm:$0xff]
    %v1373 = vld [vmem:[%s1360 + $0x60] sm:$0xff]
    %v1374 = vld [vmem:[%s1360 + $0x68] sm:$0xff]
    %v1375 = vld [vmem:[%s1360 + $0x70] sm:$0xff]
    %v1376 = vld [vmem:[%s1360 + $0x78] sm:$0xff]
    %v1377 = vld [vmem:[%s1360 + $0x80] sm:$0xff]
    %v1378 = vld [vmem:[%s1360 + $0x88] sm:$0xff]
    %v1379 = vld [vmem:[%s1360 + $0x90] sm:$0xff]
    %v1380 = vld [vmem:[%s1360 + $0x98] sm:$0xff]
    %v1381 = vld [vmem:[%s1360 + $0xa0] sm:$0xff]
    %v1382 = vld [vmem:[%s1360 + $0xa8] sm:$0xff]
    %v1383 = vld [vmem:[%s1360 + $0xb0] sm:$0xff]
    %v1384 = vld [vmem:[%s1360 + $0xb8] sm:$0xff]
    %v1385 = vld [vmem:[%s1360 + $0xc0] sm:$0xff]
    %v1386 = vld [vmem:[%s1360 + $0xc8] sm:$0xff]
    %v1387 = vld [vmem:[%s1360 + $0xd0] sm:$0xff]
    %v1388 = vld [vmem:[%s1360 + $0xd8] sm:$0xff]
    %v1389 = vld [vmem:[%s1360 + $0xe0] sm:$0xff]
    %v1390 = vld [vmem:[%s1360 + $0xe8] sm:$0xff]
    %v1391 = vld [vmem:[%s1360 + $0xf0] sm:$0xff]
    %v1392 = vld [vmem:[%s1360 + $0xf8] sm:$0xff]
    %v1425 = vunpack.c.l.b16 %v1361
    %v1426 = vunpack.c.h.b16 %v1361
    %v1427 = vunpack.c.l.b16 %v1362
    %v1428 = vunpack.c.h.b16 %v1362
    %v1429 = vunpack.c.l.b16 %v1363
    %v1430 = vunpack.c.h.b16 %v1363
    %v1431 = vunpack.c.l.b16 %v1364
    %v1432 = vunpack.c.h.b16 %v1364
    %v1433 = vunpack.c.l.b16 %v1365
    %v1434 = vunpack.c.h.b16 %v1365
    %v1435 = vunpack.c.l.b16 %v1366
    %v1436 = vunpack.c.h.b16 %v1366
    %v1437 = vunpack.c.l.b16 %v1367
    %v1438 = vunpack.c.h.b16 %v1367
    %v1439 = vunpack.c.l.b16 %v1368
    %v1440 = vunpack.c.h.b16 %v1368
    %v1441 = vunpack.c.l.b16 %v1369
    %v1442 = vunpack.c.h.b16 %v1369
    %v1443 = vunpack.c.l.b16 %v1370
    %v1444 = vunpack.c.h.b16 %v1370
    %v1445 = vunpack.c.l.b16 %v1371
    %v1446 = vunpack.c.h.b16 %v1371
    %v1447 = vunpack.c.l.b16 %v1372
    %v1448 = vunpack.c.h.b16 %v1372
    %v1449 = vunpack.c.l.b16 %v1373
    %v1450 = vunpack.c.h.b16 %v1373
    %v1451 = vunpack.c.l.b16 %v1374
    %v1452 = vunpack.c.h.b16 %v1374
    %v1453 = vunpack.c.l.b16 %v1375
    %v1454 = vunpack.c.h.b16 %v1375
    %v1455 = vunpack.c.l.b16 %v1376
    %v1456 = vunpack.c.h.b16 %v1376
    %v1457 = vunpack.c.l.b16 %v1377
    %v1458 = vunpack.c.h.b16 %v1377
    %v1459 = vunpack.c.l.b16 %v1378
    %v1460 = vunpack.c.h.b16 %v1378
    %v1461 = vunpack.c.l.b16 %v1379
    %v1462 = vunpack.c.h.b16 %v1379
    %v1463 = vunpack.c.l.b16 %v1380
    %v1464 = vunpack.c.h.b16 %v1380
    %v1465 = vunpack.c.l.b16 %v1381
    %v1466 = vunpack.c.h.b16 %v1381
    %v1467 = vunpack.c.l.b16 %v1382
    %v1468 = vunpack.c.h.b16 %v1382
    %v1469 = vunpack.c.l.b16 %v1383
    %v1470 = vunpack.c.h.b16 %v1383
    %v1471 = vunpack.c.l.b16 %v1384
    %v1472 = vunpack.c.h.b16 %v1384
    %v1473 = vunpack.c.l.b16 %v1385
    %v1474 = vunpack.c.h.b16 %v1385
    %v1475 = vunpack.c.l.b16 %v1386
    %v1476 = vunpack.c.h.b16 %v1386
    %v1477 = vunpack.c.l.b16 %v1387
    %v1478 = vunpack.c.h.b16 %v1387
    %v1479 = vunpack.c.l.b16 %v1388
    %v1480 = vunpack.c.h.b16 %v1388
    %v1481 = vunpack.c.l.b16 %v1389
    %v1482 = vunpack.c.h.b16 %v1389
    %v1483 = vunpack.c.l.b16 %v1390
    %v1484 = vunpack.c.h.b16 %v1390
    %v1485 = vunpack.c.l.b16 %v1391
    %v1486 = vunpack.c.h.b16 %v1391
    %v1487 = vunpack.c.l.b16 %v1392
    %v1488 = vunpack.c.h.b16 %v1392
    %v1489 = vpack.c.b16 %v1427, %v1425
    %v1490 = vpack.c.b16 %v1428, %v1426
    %v1491 = vpack.c.b16 %v1431, %v1429
    %v1492 = vpack.c.b16 %v1432, %v1430
    %v1493 = vpack.c.b16 %v1435, %v1433
    %v1494 = vpack.c.b16 %v1436, %v1434
    %v1495 = vpack.c.b16 %v1439, %v1437
    %v1496 = vpack.c.b16 %v1440, %v1438
    %v1497 = vpack.c.b16 %v1443, %v1441
    %v1498 = vpack.c.b16 %v1444, %v1442
    %v1499 = vpack.c.b16 %v1447, %v1445
    %v1500 = vpack.c.b16 %v1448, %v1446
    %v1501 = vpack.c.b16 %v1451, %v1449
    %v1502 = vpack.c.b16 %v1452, %v1450
    %v1503 = vpack.c.b16 %v1455, %v1453
    %v1504 = vpack.c.b16 %v1456, %v1454
    %v1505 = vpack.c.b16 %v1459, %v1457
    %v1506 = vpack.c.b16 %v1460, %v1458
    %v1507 = vpack.c.b16 %v1463, %v1461
    %v1508 = vpack.c.b16 %v1464, %v1462
    %v1509 = vpack.c.b16 %v1467, %v1465
    %v1510 = vpack.c.b16 %v1468, %v1466
    %v1511 = vpack.c.b16 %v1471, %v1469
    %v1512 = vpack.c.b16 %v1472, %v1470
    %v1513 = vpack.c.b16 %v1475, %v1473
    %v1514 = vpack.c.b16 %v1476, %v1474
    %v1515 = vpack.c.b16 %v1479, %v1477
    %v1516 = vpack.c.b16 %v1480, %v1478
    %v1517 = vpack.c.b16 %v1483, %v1481
    %v1518 = vpack.c.b16 %v1484, %v1482
    %v1519 = vpack.c.b16 %v1487, %v1485
    %v1520 = vpack.c.b16 %v1488, %v1486
    %1553 = vmatprep.subr.bf16.mxu0 %v1490
    %1554 = vmatpush1.bf16.msra.mxu0 %v1489
    %1555 = vmatprep.subr.bf16.mxu0 %v1492
    %1556 = vmatpush1.bf16.msra.mxu0 %v1491
    %1557 = vmatprep.subr.bf16.mxu0 %v1494
    %1558 = vmatpush1.bf16.msra.mxu0 %v1493
    %1559 = vmatprep.subr.bf16.mxu0 %v1496
    %1560 = vmatpush1.bf16.msra.mxu0 %v1495
    %1561 = vmatprep.subr.bf16.mxu0 %v1498
    %1562 = vmatpush1.bf16.msra.mxu0 %v1497
    %1563 = vmatprep.subr.bf16.mxu0 %v1500
    %1564 = vmatpush1.bf16.msra.mxu0 %v1499
    %1565 = vmatprep.subr.bf16.mxu0 %v1502
    %1566 = vmatpush1.bf16.msra.mxu0 %v1501
    %1567 = vmatprep.subr.bf16.mxu0 %v1504
    %1568 = vmatpush1.bf16.msra.mxu0 %v1503
    %1569 = vmatprep.subr.bf16.mxu0 %v1506
    %1570 = vmatpush1.bf16.msra.mxu0 %v1505
    %1571 = vmatprep.subr.bf16.mxu0 %v1508
    %1572 = vmatpush1.bf16.msra.mxu0 %v1507
    %1573 = vmatprep.subr.bf16.mxu0 %v1510
    %1574 = vmatpush1.bf16.msra.mxu0 %v1509
    %1575 = vmatprep.subr.bf16.mxu0 %v1512
    %1576 = vmatpush1.bf16.msra.mxu0 %v1511
    %1577 = vmatprep.subr.bf16.mxu0 %v1514
    %1578 = vmatpush1.bf16.msra.mxu0 %v1513
    %1579 = vmatprep.subr.bf16.mxu0 %v1516
    %1580 = vmatpush1.bf16.msra.mxu0 %v1515
    %1581 = vmatprep.subr.bf16.mxu0 %v1518
    %1582 = vmatpush1.bf16.msra.mxu0 %v1517
    %1583 = vmatprep.subr.bf16.mxu0 %v1520
    %1584 = vmatpush1.bf16.msra.mxu0 %v1519
    %1585 = vmatprep.mubr.bf16.mxu0 %v1087
    %1586 = vmatmul.mubr.bf16.gmra.mrb[0].mxu0 %v1086
    %v1587 = vpop.f32.mrb[0].mxu0
    %v1588 = vadd.f32 0.0, %v1587
    %v1589 = vpop.f32.mrb[0].mxu0
    %v1590 = vadd.f32 0.0, %v1589
    %v1591 = vpop.f32.mrb[0].mxu0
    %v1592 = vadd.f32 0.0, %v1591
    %v1593 = vpop.f32.mrb[0].mxu0
    %v1594 = vadd.f32 0.0, %v1593
    %1595 = vmatprep.mubr.bf16.mxu0 %v1089
    %1596 = vmatmul.mubr.bf16.gmra.mrb[0].mxu0 %v1088
    %v1597 = vpop.f32.mrb[0].mxu0
    %v1598 = vadd.f32 0.0, %v1597
    %v1599 = vpop.f32.mrb[0].mxu0
    %v1600 = vadd.f32 0.0, %v1599
    %v1601 = vpop.f32.mrb[0].mxu0
    %v1602 = vadd.f32 0.0, %v1601
    %v1603 = vpop.f32.mrb[0].mxu0
    %v1604 = vadd.f32 0.0, %v1603
    %1605 = vmatprep.mubr.bf16.mxu0 %v1091
    %1606 = vmatmul.mubr.bf16.gmra.mrb[0].mxu0 %v1090
    %v1607 = vpop.f32.mrb[0].mxu0
    %v1608 = vadd.f32 0.0, %v1607
    %v1609 = vpop.f32.mrb[0].mxu0
    %v1610 = vadd.f32 0.0, %v1609
    %v1611 = vpop.f32.mrb[0].mxu0
    %v1612 = vadd.f32 0.0, %v1611
    %v1613 = vpop.f32.mrb[0].mxu0
    %v1614 = vadd.f32 0.0, %v1613
    %1615 = vmatprep.mubr.bf16.mxu0 %v1093
    %1616 = vmatmul.mubr.bf16.gmra.mrb[0].mxu0 %v1092
    %v1617 = vpop.f32.mrb[0].mxu0
    %v1618 = vadd.f32 0.0, %v1617
    %v1619 = vpop.f32.mrb[0].mxu0
    %v1620 = vadd.f32 0.0, %v1619
    %v1621 = vpop.f32.mrb[0].mxu0
    %v1622 = vadd.f32 0.0, %v1621
    %v1623 = vpop.f32.mrb[0].mxu0
    %v1624 = vadd.f32 0.0, %v1623
    %1625 = vdwg.mxu0
    %v1626 = vpack.c.bf16 %v1326, %v1322
    %v1627 = vpack.c.bf16 %v1328, %v1324
    %v1628 = vpack.c.bf16 %v1336, %v1332
    %v1629 = vpack.c.bf16 %v1338, %v1334
    %v1630 = vpack.c.bf16 %v1346, %v1342
    %v1631 = vpack.c.bf16 %v1348, %v1344
    %v1632 = vpack.c.bf16 %v1356, %v1352
    %v1633 = vpack.c.bf16 %v1358, %v1354
    %v1634 = vpack.c.bf16 %v1592, %v1588
    %v1635 = vpack.c.bf16 %v1594, %v1590
    %v1636 = vpack.c.bf16 %v1602, %v1598
    %v1637 = vpack.c.bf16 %v1604, %v1600
    %v1638 = vpack.c.bf16 %v1612, %v1608
    %v1639 = vpack.c.bf16 %v1614, %v1610
    %v1640 = vpack.c.bf16 %v1622, %v1618
    %v1641 = vpack.c.bf16 %v1624, %v1620
    %s1642 = scalar_lea.vmem %s4, 2
    %v1643 = vld [vmem:[%s1642] ss:$8 sm:$0x3]
    %s1644 = scalar_lea.vmem %s4, 3
    %v1645 = vld [vmem:[%s1644] ss:$8 sm:$0x3]
    %v1647 = vlaneseq
    %v1648 = vshrl.u32 %v1647, 7
    %v1649 = vsub.s32 0, %v1648
    %v1650 = vrot.slane %v1643, %v1649
    %v1651 = vlaneseq
    %v1652 = vshrl.u32 %v1651, 7
    %v1653 = vsub.s32 1, %v1652
    %v1654 = vrot.slane %v1643, %v1653
    %v1658 = vlaneseq
    %v1659 = vshrl.u32 %v1658, 7
    %v1660 = vsub.s32 0, %v1659
    %v1661 = vrot.slane %v1645, %v1660
    %v1662 = vlaneseq
    %v1663 = vshrl.u32 %v1662, 7
    %v1664 = vsub.s32 1, %v1663
    %v1665 = vrot.slane %v1645, %v1664
    %v1668 = vsel %vm85, %v1650, %v1661
    %v1669 = vsel %vm85, %v1654, %v1665
    %v1670 = vsel %vm86, %v1650, %v1661
    %v1671 = vsel %vm86, %v1654, %v1665
    %v1672 = vsel %vm87, %v1650, %v1661
    %v1673 = vsel %vm87, %v1654, %v1665
    %v1674 = vsel %vm88, %v1650, %v1661
    %v1675 = vsel %vm88, %v1654, %v1665
    %v1676 = vsel %vm89, %v1650, %v1661
    %v1677 = vsel %vm89, %v1654, %v1665
    %v1678 = vsel %vm90, %v1650, %v1661
    %v1679 = vsel %vm90, %v1654, %v1665
    %v1680 = vsel %vm91, %v1650, %v1661
    %v1681 = vsel %vm91, %v1654, %v1665
    %v1682 = vsel %vm92, %v1650, %v1661
    %v1683 = vsel %vm92, %v1654, %v1665
    %v1684 = vsel %vm93, %v1650, %v1661
    %v1685 = vsel %vm93, %v1654, %v1665
    %v1686 = vsel %vm94, %v1650, %v1661
    %v1687 = vsel %vm94, %v1654, %v1665
    %v1688 = vsel %vm95, %v1650, %v1661
    %v1689 = vsel %vm95, %v1654, %v1665
    %v1690 = vsel %vm96, %v1650, %v1661
    %v1691 = vsel %vm96, %v1654, %v1665
    %v1692 = vsel %vm97, %v1650, %v1661
    %v1693 = vsel %vm97, %v1654, %v1665
    %v1694 = vsel %vm98, %v1650, %v1661
    %v1695 = vsel %vm98, %v1654, %v1665
    %v1696 = vsel %vm99, %v1650, %v1661
    %v1697 = vsel %vm99, %v1654, %v1665
    %v1698 = vsel %vm100, %v1650, %v1661
    %v1699 = vsel %vm100, %v1654, %v1665
    %1700 = vmatprep.subr.bf16.mxu0 %v1627
    %1701 = vmatpush1.bf16.msra.mxu0 %v1626
    %1702 = vmatprep.subr.bf16.mxu0 %v1629
    %1703 = vmatpush1.bf16.msra.mxu0 %v1628
    %1704 = vmatprep.subr.bf16.mxu0 %v1631
    %1705 = vmatpush1.bf16.msra.mxu0 %v1630
    %1706 = vmatprep.subr.bf16.mxu0 %v1633
    %1707 = vmatpush1.bf16.msra.mxu0 %v1632
    %1708 = vmatprep.subr.bf16.mxu0 %v1635
    %1709 = vmatpush1.bf16.msra.mxu0 %v1634
    %1710 = vmatprep.subr.bf16.mxu0 %v1637
    %1711 = vmatpush1.bf16.msra.mxu0 %v1636
    %1712 = vmatprep.subr.bf16.mxu0 %v1639
    %1713 = vmatpush1.bf16.msra.mxu0 %v1638
    %1714 = vmatprep.subr.bf16.mxu0 %v1641
    %1715 = vmatpush1.bf16.msra.mxu0 %v1640
    %1716 = vmatprep.subr.bf16.mxu0 0
    %1717 = vmatpush1.bf16.msra.mxu0 0
    %1718 = vmatprep.subr.bf16.mxu0 0
    %1719 = vmatpush1.bf16.msra.mxu0 0
    %1720 = vmatprep.subr.bf16.mxu0 0
    %1721 = vmatpush1.bf16.msra.mxu0 0
    %1722 = vmatprep.subr.bf16.mxu0 0
    %1723 = vmatpush1.bf16.msra.mxu0 0
    %1724 = vmatprep.subr.bf16.mxu0 0
    %1725 = vmatpush1.bf16.msra.mxu0 0
    %1726 = vmatprep.subr.bf16.mxu0 0
    %1727 = vmatpush1.bf16.msra.mxu0 0
    %1728 = vmatprep.subr.bf16.mxu0 0
    %1729 = vmatpush1.bf16.msra.mxu0 0
    %1730 = vmatprep.subr.bf16.mxu0 0
    %1731 = vmatpush1.bf16.msra.mxu0 0
    %1732 = vmatprep.mubr.bf16.mxu0 0
    %1733 = vmatmul.mubr.bf16.gmra.mrb[0].mxu0 %v833
    %v1734 = vpop.f32.mrb[0].mxu0
    %v1735 = vadd.f32 %v1668, %v1734
    %v1736 = vpop.f32.mrb[0].mxu0
    %v1737 = vadd.f32 %v1669, %v1736
    %v1738 = vpop.f32.mrb[0].mxu0
    %v1739 = vadd.f32 %v1670, %v1738
    %v1740 = vpop.f32.mrb[0].mxu0
    %v1741 = vadd.f32 %v1671, %v1740
    %1742 = vmatprep.mubr.bf16.mxu0 0
    %1743 = vmatmul.mubr.bf16.gmra.mrb[0].mxu0 %v834
    %v1744 = vpop.f32.mrb[0].mxu0
    %v1745 = vadd.f32 %v1672, %v1744
    %v1746 = vpop.f32.mrb[0].mxu0
    %v1747 = vadd.f32 %v1673, %v1746
    %v1748 = vpop.f32.mrb[0].mxu0
    %v1749 = vadd.f32 %v1674, %v1748
    %v1750 = vpop.f32.mrb[0].mxu0
    %v1751 = vadd.f32 %v1675, %v1750
    %1752 = vmatprep.mubr.bf16.mxu0 0
    %1753 = vmatmul.mubr.bf16.gmra.mrb[0].mxu0 %v835
    %v1754 = vpop.f32.mrb[0].mxu0
    %v1755 = vadd.f32 %v1676, %v1754
    %v1756 = vpop.f32.mrb[0].mxu0
    %v1757 = vadd.f32 %v1677, %v1756
    %v1758 = vpop.f32.mrb[0].mxu0
    %v1759 = vadd.f32 %v1678, %v1758
    %v1760 = vpop.f32.mrb[0].mxu0
    %v1761 = vadd.f32 %v1679, %v1760
    %1762 = vmatprep.mubr.bf16.mxu0 0
    %1763 = vmatmul.mubr.bf16.gmra.mrb[0].mxu0 %v836
    %v1764 = vpop.f32.mrb[0].mxu0
    %v1765 = vadd.f32 %v1680, %v1764
    %v1766 = vpop.f32.mrb[0].mxu0
    %v1767 = vadd.f32 %v1681, %v1766
    %v1768 = vpop.f32.mrb[0].mxu0
    %v1769 = vadd.f32 %v1682, %v1768
    %v1770 = vpop.f32.mrb[0].mxu0
    %v1771 = vadd.f32 %v1683, %v1770
    %1772 = vmatprep.mubr.bf16.mxu0 0
    %1773 = vmatmul.mubr.bf16.gmra.mrb[0].mxu0 %v837
    %v1774 = vpop.f32.mrb[0].mxu0
    %v1775 = vadd.f32 %v1684, %v1774
    %v1776 = vpop.f32.mrb[0].mxu0
    %v1777 = vadd.f32 %v1685, %v1776
    %v1778 = vpop.f32.mrb[0].mxu0
    %v1779 = vadd.f32 %v1686, %v1778
    %v1780 = vpop.f32.mrb[0].mxu0
    %v1781 = vadd.f32 %v1687, %v1780
    %1782 = vmatprep.mubr.bf16.mxu0 0
    %1783 = vmatmul.mubr.bf16.gmra.mrb[0].mxu0 %v838
    %v1784 = vpop.f32.mrb[0].mxu0
    %v1785 = vadd.f32 %v1688, %v1784
    %v1786 = vpop.f32.mrb[0].mxu0
    %v1787 = vadd.f32 %v1689, %v1786
    %v1788 = vpop.f32.mrb[0].mxu0
    %v1789 = vadd.f32 %v1690, %v1788
    %v1790 = vpop.f32.mrb[0].mxu0
    %v1791 = vadd.f32 %v1691, %v1790
    %1792 = vmatprep.mubr.bf16.mxu0 0
    %1793 = vmatmul.mubr.bf16.gmra.mrb[0].mxu0 %v839
    %v1794 = vpop.f32.mrb[0].mxu0
    %v1795 = vadd.f32 %v1692, %v1794
    %v1796 = vpop.f32.mrb[0].mxu0
    %v1797 = vadd.f32 %v1693, %v1796
    %v1798 = vpop.f32.mrb[0].mxu0
    %v1799 = vadd.f32 %v1694, %v1798
    %v1800 = vpop.f32.mrb[0].mxu0
    %v1801 = vadd.f32 %v1695, %v1800
    %1802 = vmatprep.mubr.bf16.mxu0 0
    %1803 = vmatmul.mubr.bf16.gmra.mrb[0].mxu0 %v840
    %v1804 = vpop.f32.mrb[0].mxu0
    %v1805 = vadd.f32 %v1696, %v1804
    %v1806 = vpop.f32.mrb[0].mxu0
    %v1807 = vadd.f32 %v1697, %v1806
    %v1808 = vpop.f32.mrb[0].mxu0
    %v1809 = vadd.f32 %v1698, %v1808
    %v1810 = vpop.f32.mrb[0].mxu0
    %v1811 = vadd.f32 %v1699, %v1810
    %1812 = vdwg.mxu0
    %s1813 = sld [smem:[#allocation2 + $0x1]]
    %s1814 = sld [smem:[#allocation2 + $0x3]]
    %v1815 = vstv %s1813
    %v1816 = vstv %s1814
    %v1817 = vsel %vm85, %v1815, %v1816
    %v1818 = vsel %vm86, %v1815, %v1816
    %v1819 = vsel %vm87, %v1815, %v1816
    %v1820 = vsel %vm88, %v1815, %v1816
    %v1821 = vsel %vm89, %v1815, %v1816
    %v1822 = vsel %vm90, %v1815, %v1816
    %v1823 = vsel %vm91, %v1815, %v1816
    %v1824 = vsel %vm92, %v1815, %v1816
    %v1825 = vsel %vm93, %v1815, %v1816
    %v1826 = vsel %vm94, %v1815, %v1816
    %v1827 = vsel %vm95, %v1815, %v1816
    %v1828 = vsel %vm96, %v1815, %v1816
    %v1829 = vsel %vm97, %v1815, %v1816
    %v1830 = vsel %vm98, %v1815, %v1816
    %v1831 = vsel %vm99, %v1815, %v1816
    %v1832 = vsel %vm100, %v1815, %v1816
    %vm1833 = vcmp.ge.f32.partialorder %v1735, 0.0
    %vm1834 = vcmp.ge.f32.partialorder %v1737, 0.0
    %vm1835 = vcmp.ge.f32.partialorder %v1739, 0.0
    %vm1836 = vcmp.ge.f32.partialorder %v1741, 0.0
    %vm1837 = vcmp.ge.f32.partialorder %v1745, 0.0
    %vm1838 = vcmp.ge.f32.partialorder %v1747, 0.0
    %vm1839 = vcmp.ge.f32.partialorder %v1749, 0.0
    %vm1840 = vcmp.ge.f32.partialorder %v1751, 0.0
    %vm1841 = vcmp.ge.f32.partialorder %v1755, 0.0
    %vm1842 = vcmp.ge.f32.partialorder %v1757, 0.0
    %vm1843 = vcmp.ge.f32.partialorder %v1759, 0.0
    %vm1844 = vcmp.ge.f32.partialorder %v1761, 0.0
    %vm1845 = vcmp.ge.f32.partialorder %v1765, 0.0
    %vm1846 = vcmp.ge.f32.partialorder %v1767, 0.0
    %vm1847 = vcmp.ge.f32.partialorder %v1769, 0.0
    %vm1848 = vcmp.ge.f32.partialorder %v1771, 0.0
    %vm1849 = vcmp.ge.f32.partialorder %v1775, 0.0
    %vm1850 = vcmp.ge.f32.partialorder %v1777, 0.0
    %vm1851 = vcmp.ge.f32.partialorder %v1779, 0.0
    %vm1852 = vcmp.ge.f32.partialorder %v1781, 0.0
    %vm1853 = vcmp.ge.f32.partialorder %v1785, 0.0
    %vm1854 = vcmp.ge.f32.partialorder %v1787, 0.0
    %vm1855 = vcmp.ge.f32.partialorder %v1789, 0.0
    %vm1856 = vcmp.ge.f32.partialorder %v1791, 0.0
    %vm1857 = vcmp.ge.f32.partialorder %v1795, 0.0
    %vm1858 = vcmp.ge.f32.partialorder %v1797, 0.0
    %vm1859 = vcmp.ge.f32.partialorder %v1799, 0.0
    %vm1860 = vcmp.ge.f32.partialorder %v1801, 0.0
    %vm1861 = vcmp.ge.f32.partialorder %v1805, 0.0
    %vm1862 = vcmp.ge.f32.partialorder %v1807, 0.0
    %vm1863 = vcmp.ge.f32.partialorder %v1809, 0.0
    %vm1864 = vcmp.ge.f32.partialorder %v1811, 0.0
    %v1865 = vmul.f32 %v1817, %v1735
    %v1866 = vmul.f32 %v1817, %v1737
    %v1867 = vmul.f32 %v1818, %v1739
    %v1868 = vmul.f32 %v1818, %v1741
    %v1869 = vmul.f32 %v1819, %v1745
    %v1870 = vmul.f32 %v1819, %v1747
    %v1871 = vmul.f32 %v1820, %v1749
    %v1872 = vmul.f32 %v1820, %v1751
    %v1873 = vmul.f32 %v1821, %v1755
    %v1874 = vmul.f32 %v1821, %v1757
    %v1875 = vmul.f32 %v1822, %v1759
    %v1876 = vmul.f32 %v1822, %v1761
    %v1877 = vmul.f32 %v1823, %v1765
    %v1878 = vmul.f32 %v1823, %v1767
    %v1879 = vmul.f32 %v1824, %v1769
    %v1880 = vmul.f32 %v1824, %v1771
    %v1881 = vmul.f32 %v1825, %v1775
    %v1882 = vmul.f32 %v1825, %v1777
    %v1883 = vmul.f32 %v1826, %v1779
    %v1884 = vmul.f32 %v1826, %v1781
    %v1885 = vmul.f32 %v1827, %v1785
    %v1886 = vmul.f32 %v1827, %v1787
    %v1887 = vmul.f32 %v1828, %v1789
    %v1888 = vmul.f32 %v1828, %v1791
    %v1889 = vmul.f32 %v1829, %v1795
    %v1890 = vmul.f32 %v1829, %v1797
    %v1891 = vmul.f32 %v1830, %v1799
    %v1892 = vmul.f32 %v1830, %v1801
    %v1893 = vmul.f32 %v1831, %v1805
    %v1894 = vmul.f32 %v1831, %v1807
    %v1895 = vmul.f32 %v1832, %v1809
    %v1896 = vmul.f32 %v1832, %v1811
    %v1897 = vsel %vm1833, %v1735, %v1865
    %v1898 = vsel %vm1834, %v1737, %v1866
    %v1899 = vsel %vm1835, %v1739, %v1867
    %v1900 = vsel %vm1836, %v1741, %v1868
    %v1901 = vsel %vm1837, %v1745, %v1869
    %v1902 = vsel %vm1838, %v1747, %v1870
    %v1903 = vsel %vm1839, %v1749, %v1871
    %v1904 = vsel %vm1840, %v1751, %v1872
    %v1905 = vsel %vm1841, %v1755, %v1873
    %v1906 = vsel %vm1842, %v1757, %v1874
    %v1907 = vsel %vm1843, %v1759, %v1875
    %v1908 = vsel %vm1844, %v1761, %v1876
    %v1909 = vsel %vm1845, %v1765, %v1877
    %v1910 = vsel %vm1846, %v1767, %v1878
    %v1911 = vsel %vm1847, %v1769, %v1879
    %v1912 = vsel %vm1848, %v1771, %v1880
    %v1913 = vsel %vm1849, %v1775, %v1881
    %v1914 = vsel %vm1850, %v1777, %v1882
    %v1915 = vsel %vm1851, %v1779, %v1883
    %v1916 = vsel %vm1852, %v1781, %v1884
    %v1917 = vsel %vm1853, %v1785, %v1885
    %v1918 = vsel %vm1854, %v1787, %v1886
    %v1919 = vsel %vm1855, %v1789, %v1887
    %v1920 = vsel %vm1856, %v1791, %v1888
    %v1921 = vsel %vm1857, %v1795, %v1889
    %v1922 = vsel %vm1858, %v1797, %v1890
    %v1923 = vsel %vm1859, %v1799, %v1891
    %v1924 = vsel %vm1860, %v1801, %v1892
    %v1925 = vsel %vm1861, %v1805, %v1893
    %v1926 = vsel %vm1862, %v1807, %v1894
    %v1927 = vsel %vm1863, %v1809, %v1895
    %v1928 = vsel %vm1864, %v1811, %v1896
    %v1929 = vpack.c.bf16 %v1899, %v1897
    %v1930 = vpack.c.bf16 %v1900, %v1898
    %v1931 = vpack.c.bf16 %v1903, %v1901
    %v1932 = vpack.c.bf16 %v1904, %v1902
    %v1933 = vpack.c.bf16 %v1907, %v1905
    %v1934 = vpack.c.bf16 %v1908, %v1906
    %v1935 = vpack.c.bf16 %v1911, %v1909
    %v1936 = vpack.c.bf16 %v1912, %v1910
    %v1937 = vpack.c.bf16 %v1915, %v1913
    %v1938 = vpack.c.bf16 %v1916, %v1914
    %v1939 = vpack.c.bf16 %v1919, %v1917
    %v1940 = vpack.c.bf16 %v1920, %v1918
    %v1941 = vpack.c.bf16 %v1923, %v1921
    %v1942 = vpack.c.bf16 %v1924, %v1922
    %v1943 = vpack.c.bf16 %v1927, %v1925
    %v1944 = vpack.c.bf16 %v1928, %v1926
    %s1945 = scalar_lea.vmem [#allocation6], 1024
    %v1946 = vld [vmem:[%s1945] sm:$0xff]
    %v1947 = vld [vmem:[%s1945 + $0x8] sm:$0xff]
    %v1948 = vld [vmem:[%s1945 + $0x10] sm:$0xff]
    %v1949 = vld [vmem:[%s1945 + $0x18] sm:$0xff]
    %v1950 = vld [vmem:[%s1945 + $0x20] sm:$0xff]
    %v1951 = vld [vmem:[%s1945 + $0x28] sm:$0xff]
    %v1952 = vld [vmem:[%s1945 + $0x30] sm:$0xff]
    %v1953 = vld [vmem:[%s1945 + $0x38] sm:$0xff]
    %v1954 = vld [vmem:[%s1945 + $0x40] sm:$0xff]
    %v1955 = vld [vmem:[%s1945 + $0x48] sm:$0xff]
    %v1956 = vld [vmem:[%s1945 + $0x50] sm:$0xff]
    %v1957 = vld [vmem:[%s1945 + $0x58] sm:$0xff]
    %v1958 = vld [vmem:[%s1945 + $0x60] sm:$0xff]
    %v1959 = vld [vmem:[%s1945 + $0x68] sm:$0xff]
    %v1960 = vld [vmem:[%s1945 + $0x70] sm:$0xff]
    %v1961 = vld [vmem:[%s1945 + $0x78] sm:$0xff]
    %v1962 = vld [vmem:[%s1945 + $0x80] sm:$0xff]
    %v1963 = vld [vmem:[%s1945 + $0x88] sm:$0xff]
    %v1964 = vld [vmem:[%s1945 + $0x90] sm:$0xff]
    %v1965 = vld [vmem:[%s1945 + $0x98] sm:$0xff]
    %v1966 = vld [vmem:[%s1945 + $0xa0] sm:$0xff]
    %v1967 = vld [vmem:[%s1945 + $0xa8] sm:$0xff]
    %v1968 = vld [vmem:[%s1945 + $0xb0] sm:$0xff]
    %v1969 = vld [vmem:[%s1945 + $0xb8] sm:$0xff]
    %v1970 = vld [vmem:[%s1945 + $0xc0] sm:$0xff]
    %v1971 = vld [vmem:[%s1945 + $0xc8] sm:$0xff]
    %v1972 = vld [vmem:[%s1945 + $0xd0] sm:$0xff]
    %v1973 = vld [vmem:[%s1945 + $0xd8] sm:$0xff]
    %v1974 = vld [vmem:[%s1945 + $0xe0] sm:$0xff]
    %v1975 = vld [vmem:[%s1945 + $0xe8] sm:$0xff]
    %v1976 = vld [vmem:[%s1945 + $0xf0] sm:$0xff]
    %v1977 = vld [vmem:[%s1945 + $0xf8] sm:$0xff]
    %v2010 = vunpack.c.l.b16 %v1946
    %v2011 = vunpack.c.h.b16 %v1946
    %v2012 = vunpack.c.l.b16 %v1947
    %v2013 = vunpack.c.h.b16 %v1947
    %v2014 = vunpack.c.l.b16 %v1948
    %v2015 = vunpack.c.h.b16 %v1948
    %v2016 = vunpack.c.l.b16 %v1949
    %v2017 = vunpack.c.h.b16 %v1949
    %v2018 = vunpack.c.l.b16 %v1950
    %v2019 = vunpack.c.h.b16 %v1950
    %v2020 = vunpack.c.l.b16 %v1951
    %v2021 = vunpack.c.h.b16 %v1951
    %v2022 = vunpack.c.l.b16 %v1952
    %v2023 = vunpack.c.h.b16 %v1952
    %v2024 = vunpack.c.l.b16 %v1953
    %v2025 = vunpack.c.h.b16 %v1953
    %v2026 = vunpack.c.l.b16 %v1954
    %v2027 = vunpack.c.h.b16 %v1954
    %v2028 = vunpack.c.l.b16 %v1955
    %v2029 = vunpack.c.h.b16 %v1955
    %v2030 = vunpack.c.l.b16 %v1956
    %v2031 = vunpack.c.h.b16 %v1956
    %v2032 = vunpack.c.l.b16 %v1957
    %v2033 = vunpack.c.h.b16 %v1957
    %v2034 = vunpack.c.l.b16 %v1958
    %v2035 = vunpack.c.h.b16 %v1958
    %v2036 = vunpack.c.l.b16 %v1959
    %v2037 = vunpack.c.h.b16 %v1959
    %v2038 = vunpack.c.l.b16 %v1960
    %v2039 = vunpack.c.h.b16 %v1960
    %v2040 = vunpack.c.l.b16 %v1961
    %v2041 = vunpack.c.h.b16 %v1961
    %v2042 = vunpack.c.l.b16 %v1962
    %v2043 = vunpack.c.h.b16 %v1962
    %v2044 = vunpack.c.l.b16 %v1963
    %v2045 = vunpack.c.h.b16 %v1963
    %v2046 = vunpack.c.l.b16 %v1964
    %v2047 = vunpack.c.h.b16 %v1964
    %v2048 = vunpack.c.l.b16 %v1965
    %v2049 = vunpack.c.h.b16 %v1965
    %v2050 = vunpack.c.l.b16 %v1966
    %v2051 = vunpack.c.h.b16 %v1966
    %v2052 = vunpack.c.l.b16 %v1967
    %v2053 = vunpack.c.h.b16 %v1967
    %v2054 = vunpack.c.l.b16 %v1968
    %v2055 = vunpack.c.h.b16 %v1968
    %v2056 = vunpack.c.l.b16 %v1969
    %v2057 = vunpack.c.h.b16 %v1969
    %v2058 = vunpack.c.l.b16 %v1970
    %v2059 = vunpack.c.h.b16 %v1970
    %v2060 = vunpack.c.l.b16 %v1971
    %v2061 = vunpack.c.h.b16 %v1971
    %v2062 = vunpack.c.l.b16 %v1972
    %v2063 = vunpack.c.h.b16 %v1972
    %v2064 = vunpack.c.l.b16 %v1973
    %v2065 = vunpack.c.h.b16 %v1973
    %v2066 = vunpack.c.l.b16 %v1974
    %v2067 = vunpack.c.h.b16 %v1974
    %v2068 = vunpack.c.l.b16 %v1975
    %v2069 = vunpack.c.h.b16 %v1975
    %v2070 = vunpack.c.l.b16 %v1976
    %v2071 = vunpack.c.h.b16 %v1976
    %v2072 = vunpack.c.l.b16 %v1977
    %v2073 = vunpack.c.h.b16 %v1977
    %v2074 = vpack.c.b16 %v2012, %v2010
    %v2075 = vpack.c.b16 %v2013, %v2011
    %v2076 = vpack.c.b16 %v2016, %v2014
    %v2077 = vpack.c.b16 %v2017, %v2015
    %v2078 = vpack.c.b16 %v2020, %v2018
    %v2079 = vpack.c.b16 %v2021, %v2019
    %v2080 = vpack.c.b16 %v2024, %v2022
    %v2081 = vpack.c.b16 %v2025, %v2023
    %v2082 = vpack.c.b16 %v2028, %v2026
    %v2083 = vpack.c.b16 %v2029, %v2027
    %v2084 = vpack.c.b16 %v2032, %v2030
    %v2085 = vpack.c.b16 %v2033, %v2031
    %v2086 = vpack.c.b16 %v2036, %v2034
    %v2087 = vpack.c.b16 %v2037, %v2035
    %v2088 = vpack.c.b16 %v2040, %v2038
    %v2089 = vpack.c.b16 %v2041, %v2039
    %v2090 = vpack.c.b16 %v2044, %v2042
    %v2091 = vpack.c.b16 %v2045, %v2043
    %v2092 = vpack.c.b16 %v2048, %v2046
    %v2093 = vpack.c.b16 %v2049, %v2047
    %v2094 = vpack.c.b16 %v2052, %v2050
    %v2095 = vpack.c.b16 %v2053, %v2051
    %v2096 = vpack.c.b16 %v2056, %v2054
    %v2097 = vpack.c.b16 %v2057, %v2055
    %v2098 = vpack.c.b16 %v2060, %v2058
    %v2099 = vpack.c.b16 %v2061, %v2059
    %v2100 = vpack.c.b16 %v2064, %v2062
    %v2101 = vpack.c.b16 %v2065, %v2063
    %v2102 = vpack.c.b16 %v2068, %v2066
    %v2103 = vpack.c.b16 %v2069, %v2067
    %v2104 = vpack.c.b16 %v2072, %v2070
    %v2105 = vpack.c.b16 %v2073, %v2071
    %2138 = vmatprep.subr.bf16.mxu0 %v2075
    %2139 = vmatpush1.bf16.msra.mxu0 %v2074
    %2140 = vmatprep.subr.bf16.mxu0 %v2077
    %2141 = vmatpush1.bf16.msra.mxu0 %v2076
    %2142 = vmatprep.subr.bf16.mxu0 %v2079
    %2143 = vmatpush1.bf16.msra.mxu0 %v2078
    %2144 = vmatprep.subr.bf16.mxu0 %v2081
    %2145 = vmatpush1.bf16.msra.mxu0 %v2080
    %2146 = vmatprep.subr.bf16.mxu0 %v2083
    %2147 = vmatpush1.bf16.msra.mxu0 %v2082
    %2148 = vmatprep.subr.bf16.mxu0 %v2085
    %2149 = vmatpush1.bf16.msra.mxu0 %v2084
    %2150 = vmatprep.subr.bf16.mxu0 %v2087
    %2151 = vmatpush1.bf16.msra.mxu0 %v2086
    %2152 = vmatprep.subr.bf16.mxu0 %v2089
    %2153 = vmatpush1.bf16.msra.mxu0 %v2088
    %2154 = vmatprep.subr.bf16.mxu0 %v2091
    %2155 = vmatpush1.bf16.msra.mxu0 %v2090
    %2156 = vmatprep.subr.bf16.mxu0 %v2093
    %2157 = vmatpush1.bf16.msra.mxu0 %v2092
    %2158 = vmatprep.subr.bf16.mxu0 %v2095
    %2159 = vmatpush1.bf16.msra.mxu0 %v2094
    %2160 = vmatprep.subr.bf16.mxu0 %v2097
    %2161 = vmatpush1.bf16.msra.mxu0 %v2096
    %2162 = vmatprep.subr.bf16.mxu0 %v2099
    %2163 = vmatpush1.bf16.msra.mxu0 %v2098
    %2164 = vmatprep.subr.bf16.mxu0 %v2101
    %2165 = vmatpush1.bf16.msra.mxu0 %v2100
    %2166 = vmatprep.subr.bf16.mxu0 %v2103
    %2167 = vmatpush1.bf16.msra.mxu0 %v2102
    %2168 = vmatprep.subr.bf16.mxu0 %v2105
    %2169 = vmatpush1.bf16.msra.mxu0 %v2104
    %2170 = vmatprep.mubr.bf16.mxu0 %v1930
    %2171 = vmatmul.mubr.bf16.gmra.mrb[0].mxu0 %v1929
    %v2172 = vpop.f32.mrb[0].mxu0
    %v2173 = vadd.f32 0.0, %v2172
    %v2174 = vpop.f32.mrb[0].mxu0
    %v2175 = vadd.f32 0.0, %v2174
    %v2176 = vpop.f32.mrb[0].mxu0
    %v2177 = vadd.f32 0.0, %v2176
    %v2178 = vpop.f32.mrb[0].mxu0
    %v2179 = vadd.f32 0.0, %v2178
    %2180 = vmatprep.mubr.bf16.mxu0 %v1932
    %2181 = vmatmul.mubr.bf16.gmra.mrb[0].mxu0 %v1931
    %v2182 = vpop.f32.mrb[0].mxu0
    %v2183 = vadd.f32 0.0, %v2182
    %v2184 = vpop.f32.mrb[0].mxu0
    %v2185 = vadd.f32 0.0, %v2184
    %v2186 = vpop.f32.mrb[0].mxu0
    %v2187 = vadd.f32 0.0, %v2186
    %v2188 = vpop.f32.mrb[0].mxu0
    %v2189 = vadd.f32 0.0, %v2188
    %2190 = vmatprep.mubr.bf16.mxu0 %v1934
    %2191 = vmatmul.mubr.bf16.gmra.mrb[0].mxu0 %v1933
    %v2192 = vpop.f32.mrb[0].mxu0
    %v2193 = vadd.f32 0.0, %v2192
    %v2194 = vpop.f32.mrb[0].mxu0
    %v2195 = vadd.f32 0.0, %v2194
    %v2196 = vpop.f32.mrb[0].mxu0
    %v2197 = vadd.f32 0.0, %v2196
    %v2198 = vpop.f32.mrb[0].mxu0
    %v2199 = vadd.f32 0.0, %v2198
    %2200 = vmatprep.mubr.bf16.mxu0 %v1936
    %2201 = vmatmul.mubr.bf16.gmra.mrb[0].mxu0 %v1935
    %v2202 = vpop.f32.mrb[0].mxu0
    %v2203 = vadd.f32 0.0, %v2202
    %v2204 = vpop.f32.mrb[0].mxu0
    %v2205 = vadd.f32 0.0, %v2204
    %v2206 = vpop.f32.mrb[0].mxu0
    %v2207 = vadd.f32 0.0, %v2206
    %v2208 = vpop.f32.mrb[0].mxu0
    %v2209 = vadd.f32 0.0, %v2208
    %2210 = vdwg.mxu0
    %s2211 = scalar_lea.vmem [#allocation6], 1280
    %v2212 = vld [vmem:[%s2211] sm:$0xff]
    %v2213 = vld [vmem:[%s2211 + $0x8] sm:$0xff]
    %v2214 = vld [vmem:[%s2211 + $0x10] sm:$0xff]
    %v2215 = vld [vmem:[%s2211 + $0x18] sm:$0xff]
    %v2216 = vld [vmem:[%s2211 + $0x20] sm:$0xff]
    %v2217 = vld [vmem:[%s2211 + $0x28] sm:$0xff]
    %v2218 = vld [vmem:[%s2211 + $0x30] sm:$0xff]
    %v2219 = vld [vmem:[%s2211 + $0x38] sm:$0xff]
    %v2220 = vld [vmem:[%s2211 + $0x40] sm:$0xff]
    %v2221 = vld [vmem:[%s2211 + $0x48] sm:$0xff]
    %v2222 = vld [vmem:[%s2211 + $0x50] sm:$0xff]
    %v2223 = vld [vmem:[%s2211 + $0x58] sm:$0xff]
    %v2224 = vld [vmem:[%s2211 + $0x60] sm:$0xff]
    %v2225 = vld [vmem:[%s2211 + $0x68] sm:$0xff]
    %v2226 = vld [vmem:[%s2211 + $0x70] sm:$0xff]
    %v2227 = vld [vmem:[%s2211 + $0x78] sm:$0xff]
    %v2228 = vld [vmem:[%s2211 + $0x80] sm:$0xff]
    %v2229 = vld [vmem:[%s2211 + $0x88] sm:$0xff]
    %v2230 = vld [vmem:[%s2211 + $0x90] sm:$0xff]
    %v2231 = vld [vmem:[%s2211 + $0x98] sm:$0xff]
    %v2232 = vld [vmem:[%s2211 + $0xa0] sm:$0xff]
    %v2233 = vld [vmem:[%s2211 + $0xa8] sm:$0xff]
    %v2234 = vld [vmem:[%s2211 + $0xb0] sm:$0xff]
    %v2235 = vld [vmem:[%s2211 + $0xb8] sm:$0xff]
    %v2236 = vld [vmem:[%s2211 + $0xc0] sm:$0xff]
    %v2237 = vld [vmem:[%s2211 + $0xc8] sm:$0xff]
    %v2238 = vld [vmem:[%s2211 + $0xd0] sm:$0xff]
    %v2239 = vld [vmem:[%s2211 + $0xd8] sm:$0xff]
    %v2240 = vld [vmem:[%s2211 + $0xe0] sm:$0xff]
    %v2241 = vld [vmem:[%s2211 + $0xe8] sm:$0xff]
    %v2242 = vld [vmem:[%s2211 + $0xf0] sm:$0xff]
    %v2243 = vld [vmem:[%s2211 + $0xf8] sm:$0xff]
    %v2276 = vunpack.c.l.b16 %v2212
    %v2277 = vunpack.c.h.b16 %v2212
    %v2278 = vunpack.c.l.b16 %v2213
    %v2279 = vunpack.c.h.b16 %v2213
    %v2280 = vunpack.c.l.b16 %v2214
    %v2281 = vunpack.c.h.b16 %v2214
    %v2282 = vunpack.c.l.b16 %v2215
    %v2283 = vunpack.c.h.b16 %v2215
    %v2284 = vunpack.c.l.b16 %v2216
    %v2285 = vunpack.c.h.b16 %v2216
    %v2286 = vunpack.c.l.b16 %v2217
    %v2287 = vunpack.c.h.b16 %v2217
    %v2288 = vunpack.c.l.b16 %v2218
    %v2289 = vunpack.c.h.b16 %v2218
    %v2290 = vunpack.c.l.b16 %v2219
    %v2291 = vunpack.c.h.b16 %v2219
    %v2292 = vunpack.c.l.b16 %v2220
    %v2293 = vunpack.c.h.b16 %v2220
    %v2294 = vunpack.c.l.b16 %v2221
    %v2295 = vunpack.c.h.b16 %v2221
    %v2296 = vunpack.c.l.b16 %v2222
    %v2297 = vunpack.c.h.b16 %v2222
    %v2298 = vunpack.c.l.b16 %v2223
    %v2299 = vunpack.c.h.b16 %v2223
    %v2300 = vunpack.c.l.b16 %v2224
    %v2301 = vunpack.c.h.b16 %v2224
    %v2302 = vunpack.c.l.b16 %v2225
    %v2303 = vunpack.c.h.b16 %v2225
    %v2304 = vunpack.c.l.b16 %v2226
    %v2305 = vunpack.c.h.b16 %v2226
    %v2306 = vunpack.c.l.b16 %v2227
    %v2307 = vunpack.c.h.b16 %v2227
    %v2308 = vunpack.c.l.b16 %v2228
    %v2309 = vunpack.c.h.b16 %v2228
    %v2310 = vunpack.c.l.b16 %v2229
    %v2311 = vunpack.c.h.b16 %v2229
    %v2312 = vunpack.c.l.b16 %v2230
    %v2313 = vunpack.c.h.b16 %v2230
    %v2314 = vunpack.c.l.b16 %v2231
    %v2315 = vunpack.c.h.b16 %v2231
    %v2316 = vunpack.c.l.b16 %v2232
    %v2317 = vunpack.c.h.b16 %v2232
    %v2318 = vunpack.c.l.b16 %v2233
    %v2319 = vunpack.c.h.b16 %v2233
    %v2320 = vunpack.c.l.b16 %v2234
    %v2321 = vunpack.c.h.b16 %v2234
    %v2322 = vunpack.c.l.b16 %v2235
    %v2323 = vunpack.c.h.b16 %v2235
    %v2324 = vunpack.c.l.b16 %v2236
    %v2325 = vunpack.c.h.b16 %v2236
    %v2326 = vunpack.c.l.b16 %v2237
    %v2327 = vunpack.c.h.b16 %v2237
    %v2328 = vunpack.c.l.b16 %v2238
    %v2329 = vunpack.c.h.b16 %v2238
    %v2330 = vunpack.c.l.b16 %v2239
    %v2331 = vunpack.c.h.b16 %v2239
    %v2332 = vunpack.c.l.b16 %v2240
    %v2333 = vunpack.c.h.b16 %v2240
    %v2334 = vunpack.c.l.b16 %v2241
    %v2335 = vunpack.c.h.b16 %v2241
    %v2336 = vunpack.c.l.b16 %v2242
    %v2337 = vunpack.c.h.b16 %v2242
    %v2338 = vunpack.c.l.b16 %v2243
    %v2339 = vunpack.c.h.b16 %v2243
    %v2340 = vpack.c.b16 %v2278, %v2276
    %v2341 = vpack.c.b16 %v2279, %v2277
    %v2342 = vpack.c.b16 %v2282, %v2280
    %v2343 = vpack.c.b16 %v2283, %v2281
    %v2344 = vpack.c.b16 %v2286, %v2284
    %v2345 = vpack.c.b16 %v2287, %v2285
    %v2346 = vpack.c.b16 %v2290, %v2288
    %v2347 = vpack.c.b16 %v2291, %v2289
    %v2348 = vpack.c.b16 %v2294, %v2292
    %v2349 = vpack.c.b16 %v2295, %v2293
    %v2350 = vpack.c.b16 %v2298, %v2296
    %v2351 = vpack.c.b16 %v2299, %v2297
    %v2352 = vpack.c.b16 %v2302, %v2300
    %v2353 = vpack.c.b16 %v2303, %v2301
    %v2354 = vpack.c.b16 %v2306, %v2304
    %v2355 = vpack.c.b16 %v2307, %v2305
    %v2356 = vpack.c.b16 %v2310, %v2308
    %v2357 = vpack.c.b16 %v2311, %v2309
    %v2358 = vpack.c.b16 %v2314, %v2312
    %v2359 = vpack.c.b16 %v2315, %v2313
    %v2360 = vpack.c.b16 %v2318, %v2316
    %v2361 = vpack.c.b16 %v2319, %v2317
    %v2362 = vpack.c.b16 %v2322, %v2320
    %v2363 = vpack.c.b16 %v2323, %v2321
    %v2364 = vpack.c.b16 %v2326, %v2324
    %v2365 = vpack.c.b16 %v2327, %v2325
    %v2366 = vpack.c.b16 %v2330, %v2328
    %v2367 = vpack.c.b16 %v2331, %v2329
    %v2368 = vpack.c.b16 %v2334, %v2332
    %v2369 = vpack.c.b16 %v2335, %v2333
    %v2370 = vpack.c.b16 %v2338, %v2336
    %v2371 = vpack.c.b16 %v2339, %v2337
    %2404 = vmatprep.subr.bf16.mxu0 %v2341
    %2405 = vmatpush1.bf16.msra.mxu0 %v2340
    %2406 = vmatprep.subr.bf16.mxu0 %v2343
    %2407 = vmatpush1.bf16.msra.mxu0 %v2342
    %2408 = vmatprep.subr.bf16.mxu0 %v2345
    %2409 = vmatpush1.bf16.msra.mxu0 %v2344
    %2410 = vmatprep.subr.bf16.mxu0 %v2347
    %2411 = vmatpush1.bf16.msra.mxu0 %v2346
    %2412 = vmatprep.subr.bf16.mxu0 %v2349
    %2413 = vmatpush1.bf16.msra.mxu0 %v2348
    %2414 = vmatprep.subr.bf16.mxu0 %v2351
    %2415 = vmatpush1.bf16.msra.mxu0 %v2350
    %2416 = vmatprep.subr.bf16.mxu0 %v2353
    %2417 = vmatpush1.bf16.msra.mxu0 %v2352
    %2418 = vmatprep.subr.bf16.mxu0 %v2355
    %2419 = vmatpush1.bf16.msra.mxu0 %v2354
    %2420 = vmatprep.subr.bf16.mxu0 %v2357
    %2421 = vmatpush1.bf16.msra.mxu0 %v2356
    %2422 = vmatprep.subr.bf16.mxu0 %v2359
    %2423 = vmatpush1.bf16.msra.mxu0 %v2358
    %2424 = vmatprep.subr.bf16.mxu0 %v2361
    %2425 = vmatpush1.bf16.msra.mxu0 %v2360
    %2426 = vmatprep.subr.bf16.mxu0 %v2363
    %2427 = vmatpush1.bf16.msra.mxu0 %v2362
    %2428 = vmatprep.subr.bf16.mxu0 %v2365
    %2429 = vmatpush1.bf16.msra.mxu0 %v2364
    %2430 = vmatprep.subr.bf16.mxu0 %v2367
    %2431 = vmatpush1.bf16.msra.mxu0 %v2366
    %2432 = vmatprep.subr.bf16.mxu0 %v2369
    %2433 = vmatpush1.bf16.msra.mxu0 %v2368
    %2434 = vmatprep.subr.bf16.mxu0 %v2371
    %2435 = vmatpush1.bf16.msra.mxu0 %v2370
    %2436 = vmatprep.mubr.bf16.mxu0 %v1938
    %2437 = vmatmul.mubr.bf16.gmra.mrb[0].mxu0 %v1937
    %v2438 = vpop.f32.mrb[0].mxu0
    %v2439 = vadd.f32 0.0, %v2438
    %v2440 = vpop.f32.mrb[0].mxu0
    %v2441 = vadd.f32 0.0, %v2440
    %v2442 = vpop.f32.mrb[0].mxu0
    %v2443 = vadd.f32 0.0, %v2442
    %v2444 = vpop.f32.mrb[0].mxu0
    %v2445 = vadd.f32 0.0, %v2444
    %2446 = vmatprep.mubr.bf16.mxu0 %v1940
    %2447 = vmatmul.mubr.bf16.gmra.mrb[0].mxu0 %v1939
    %v2448 = vpop.f32.mrb[0].mxu0
    %v2449 = vadd.f32 0.0, %v2448
    %v2450 = vpop.f32.mrb[0].mxu0
    %v2451 = vadd.f32 0.0, %v2450
    %v2452 = vpop.f32.mrb[0].mxu0
    %v2453 = vadd.f32 0.0, %v2452
    %v2454 = vpop.f32.mrb[0].mxu0
    %v2455 = vadd.f32 0.0, %v2454
    %2456 = vmatprep.mubr.bf16.mxu0 %v1942
    %2457 = vmatmul.mubr.bf16.gmra.mrb[0].mxu0 %v1941
    %v2458 = vpop.f32.mrb[0].mxu0
    %v2459 = vadd.f32 0.0, %v2458
    %v2460 = vpop.f32.mrb[0].mxu0
    %v2461 = vadd.f32 0.0, %v2460
    %v2462 = vpop.f32.mrb[0].mxu0
    %v2463 = vadd.f32 0.0, %v2462
    %v2464 = vpop.f32.mrb[0].mxu0
    %v2465 = vadd.f32 0.0, %v2464
    %2466 = vmatprep.mubr.bf16.mxu0 %v1944
    %2467 = vmatmul.mubr.bf16.gmra.mrb[0].mxu0 %v1943
    %v2468 = vpop.f32.mrb[0].mxu0
    %v2469 = vadd.f32 0.0, %v2468
    %v2470 = vpop.f32.mrb[0].mxu0
    %v2471 = vadd.f32 0.0, %v2470
    %v2472 = vpop.f32.mrb[0].mxu0
    %v2473 = vadd.f32 0.0, %v2472
    %v2474 = vpop.f32.mrb[0].mxu0
    %v2475 = vadd.f32 0.0, %v2474
    %2476 = vdwg.mxu0
    %v2477 = vpack.c.bf16 %v2177, %v2173
    %v2478 = vpack.c.bf16 %v2179, %v2175
    %v2479 = vpack.c.bf16 %v2187, %v2183
    %v2480 = vpack.c.bf16 %v2189, %v2185
    %v2481 = vpack.c.bf16 %v2197, %v2193
    %v2482 = vpack.c.bf16 %v2199, %v2195
    %v2483 = vpack.c.bf16 %v2207, %v2203
    %v2484 = vpack.c.bf16 %v2209, %v2205
    %v2485 = vpack.c.bf16 %v2443, %v2439
    %v2486 = vpack.c.bf16 %v2445, %v2441
    %v2487 = vpack.c.bf16 %v2453, %v2449
    %v2488 = vpack.c.bf16 %v2455, %v2451
    %v2489 = vpack.c.bf16 %v2463, %v2459
    %v2490 = vpack.c.bf16 %v2465, %v2461
    %v2491 = vpack.c.bf16 %v2473, %v2469
    %v2492 = vpack.c.bf16 %v2475, %v2471
    %s2493 = scalar_lea.vmem %s4, 4
    %v2494 = vld [vmem:[%s2493] ss:$8 sm:$0x3]
    %s2495 = scalar_lea.vmem %s4, 5
    %v2496 = vld [vmem:[%s2495] ss:$8 sm:$0x3]
    %v2498 = vlaneseq
    %v2499 = vshrl.u32 %v2498, 7
    %v2500 = vsub.s32 0, %v2499
    %v2501 = vrot.slane %v2494, %v2500
    %v2502 = vlaneseq
    %v2503 = vshrl.u32 %v2502, 7
    %v2504 = vsub.s32 1, %v2503
    %v2505 = vrot.slane %v2494, %v2504
    %v2509 = vlaneseq
    %v2510 = vshrl.u32 %v2509, 7
    %v2511 = vsub.s32 0, %v2510
    %v2512 = vrot.slane %v2496, %v2511
    %v2513 = vlaneseq
    %v2514 = vshrl.u32 %v2513, 7
    %v2515 = vsub.s32 1, %v2514
    %v2516 = vrot.slane %v2496, %v2515
    %v2519 = vsel %vm85, %v2501, %v2512
    %v2520 = vsel %vm85, %v2505, %v2516
    %v2521 = vsel %vm86, %v2501, %v2512
    %v2522 = vsel %vm86, %v2505, %v2516
    %v2523 = vsel %vm87, %v2501, %v2512
    %v2524 = vsel %vm87, %v2505, %v2516
    %v2525 = vsel %vm88, %v2501, %v2512
    %v2526 = vsel %vm88, %v2505, %v2516
    %v2527 = vsel %vm89, %v2501, %v2512
    %v2528 = vsel %vm89, %v2505, %v2516
    %v2529 = vsel %vm90, %v2501, %v2512
    %v2530 = vsel %vm90, %v2505, %v2516
    %v2531 = vsel %vm91, %v2501, %v2512
    %v2532 = vsel %vm91, %v2505, %v2516
    %v2533 = vsel %vm92, %v2501, %v2512
    %v2534 = vsel %vm92, %v2505, %v2516
    %v2535 = vsel %vm93, %v2501, %v2512
    %v2536 = vsel %vm93, %v2505, %v2516
    %v2537 = vsel %vm94, %v2501, %v2512
    %v2538 = vsel %vm94, %v2505, %v2516
    %v2539 = vsel %vm95, %v2501, %v2512
    %v2540 = vsel %vm95, %v2505, %v2516
    %v2541 = vsel %vm96, %v2501, %v2512
    %v2542 = vsel %vm96, %v2505, %v2516
    %v2543 = vsel %vm97, %v2501, %v2512
    %v2544 = vsel %vm97, %v2505, %v2516
    %v2545 = vsel %vm98, %v2501, %v2512
    %v2546 = vsel %vm98, %v2505, %v2516
    %v2547 = vsel %vm99, %v2501, %v2512
    %v2548 = vsel %vm99, %v2505, %v2516
    %v2549 = vsel %vm100, %v2501, %v2512
    %v2550 = vsel %vm100, %v2505, %v2516
    %2551 = vmatprep.subr.bf16.mxu0 %v2478
    %2552 = vmatpush1.bf16.msra.mxu0 %v2477
    %2553 = vmatprep.subr.bf16.mxu0 %v2480
    %2554 = vmatpush1.bf16.msra.mxu0 %v2479
    %2555 = vmatprep.subr.bf16.mxu0 %v2482
    %2556 = vmatpush1.bf16.msra.mxu0 %v2481
    %2557 = vmatprep.subr.bf16.mxu0 %v2484
    %2558 = vmatpush1.bf16.msra.mxu0 %v2483
    %2559 = vmatprep.subr.bf16.mxu0 %v2486
    %2560 = vmatpush1.bf16.msra.mxu0 %v2485
    %2561 = vmatprep.subr.bf16.mxu0 %v2488
    %2562 = vmatpush1.bf16.msra.mxu0 %v2487
    %2563 = vmatprep.subr.bf16.mxu0 %v2490
    %2564 = vmatpush1.bf16.msra.mxu0 %v2489
    %2565 = vmatprep.subr.bf16.mxu0 %v2492
    %2566 = vmatpush1.bf16.msra.mxu0 %v2491
    %2567 = vmatprep.subr.bf16.mxu0 0
    %2568 = vmatpush1.bf16.msra.mxu0 0
    %2569 = vmatprep.subr.bf16.mxu0 0
    %2570 = vmatpush1.bf16.msra.mxu0 0
    %2571 = vmatprep.subr.bf16.mxu0 0
    %2572 = vmatpush1.bf16.msra.mxu0 0
    %2573 = vmatprep.subr.bf16.mxu0 0
    %2574 = vmatpush1.bf16.msra.mxu0 0
    %2575 = vmatprep.subr.bf16.mxu0 0
    %2576 = vmatpush1.bf16.msra.mxu0 0
    %2577 = vmatprep.subr.bf16.mxu0 0
    %2578 = vmatpush1.bf16.msra.mxu0 0
    %2579 = vmatprep.subr.bf16.mxu0 0
    %2580 = vmatpush1.bf16.msra.mxu0 0
    %2581 = vmatprep.subr.bf16.mxu0 0
    %2582 = vmatpush1.bf16.msra.mxu0 0
    %2583 = vmatprep.mubr.bf16.mxu0 0
    %2584 = vmatmul.mubr.bf16.gmra.mrb[0].mxu0 %v833
    %v2585 = vpop.f32.mrb[0].mxu0
    %v2586 = vadd.f32 %v2519, %v2585
    %v2587 = vpop.f32.mrb[0].mxu0
    %v2588 = vadd.f32 %v2520, %v2587
    %v2589 = vpop.f32.mrb[0].mxu0
    %v2590 = vadd.f32 %v2521, %v2589
    %v2591 = vpop.f32.mrb[0].mxu0
    %v2592 = vadd.f32 %v2522, %v2591
    %2593 = vmatprep.mubr.bf16.mxu0 0
    %2594 = vmatmul.mubr.bf16.gmra.mrb[0].mxu0 %v834
    %v2595 = vpop.f32.mrb[0].mxu0
    %v2596 = vadd.f32 %v2523, %v2595
    %v2597 = vpop.f32.mrb[0].mxu0
    %v2598 = vadd.f32 %v2524, %v2597
    %v2599 = vpop.f32.mrb[0].mxu0
    %v2600 = vadd.f32 %v2525, %v2599
    %v2601 = vpop.f32.mrb[0].mxu0
    %v2602 = vadd.f32 %v2526, %v2601
    %2603 = vmatprep.mubr.bf16.mxu0 0
    %2604 = vmatmul.mubr.bf16.gmra.mrb[0].mxu0 %v835
    %v2605 = vpop.f32.mrb[0].mxu0
    %v2606 = vadd.f32 %v2527, %v2605
    %v2607 = vpop.f32.mrb[0].mxu0
    %v2608 = vadd.f32 %v2528, %v2607
    %v2609 = vpop.f32.mrb[0].mxu0
    %v2610 = vadd.f32 %v2529, %v2609
    %v2611 = vpop.f32.mrb[0].mxu0
    %v2612 = vadd.f32 %v2530, %v2611
    %2613 = vmatprep.mubr.bf16.mxu0 0
    %2614 = vmatmul.mubr.bf16.gmra.mrb[0].mxu0 %v836
    %v2615 = vpop.f32.mrb[0].mxu0
    %v2616 = vadd.f32 %v2531, %v2615
    %v2617 = vpop.f32.mrb[0].mxu0
    %v2618 = vadd.f32 %v2532, %v2617
    %v2619 = vpop.f32.mrb[0].mxu0
    %v2620 = vadd.f32 %v2533, %v2619
    %v2621 = vpop.f32.mrb[0].mxu0
    %v2622 = vadd.f32 %v2534, %v2621
    %2623 = vmatprep.mubr.bf16.mxu0 0
    %2624 = vmatmul.mubr.bf16.gmra.mrb[0].mxu0 %v837
    %v2625 = vpop.f32.mrb[0].mxu0
    %v2626 = vadd.f32 %v2535, %v2625
    %v2627 = vpop.f32.mrb[0].mxu0
    %v2628 = vadd.f32 %v2536, %v2627
    %v2629 = vpop.f32.mrb[0].mxu0
    %v2630 = vadd.f32 %v2537, %v2629
    %v2631 = vpop.f32.mrb[0].mxu0
    %v2632 = vadd.f32 %v2538, %v2631
    %2633 = vmatprep.mubr.bf16.mxu0 0
    %2634 = vmatmul.mubr.bf16.gmra.mrb[0].mxu0 %v838
    %v2635 = vpop.f32.mrb[0].mxu0
    %v2636 = vadd.f32 %v2539, %v2635
    %v2637 = vpop.f32.mrb[0].mxu0
    %v2638 = vadd.f32 %v2540, %v2637
    %v2639 = vpop.f32.mrb[0].mxu0
    %v2640 = vadd.f32 %v2541, %v2639
    %v2641 = vpop.f32.mrb[0].mxu0
    %v2642 = vadd.f32 %v2542, %v2641
    %2643 = vmatprep.mubr.bf16.mxu0 0
    %2644 = vmatmul.mubr.bf16.gmra.mrb[0].mxu0 %v839
    %v2645 = vpop.f32.mrb[0].mxu0
    %v2646 = vadd.f32 %v2543, %v2645
    %v2647 = vpop.f32.mrb[0].mxu0
    %v2648 = vadd.f32 %v2544, %v2647
    %v2649 = vpop.f32.mrb[0].mxu0
    %v2650 = vadd.f32 %v2545, %v2649
    %v2651 = vpop.f32.mrb[0].mxu0
    %v2652 = vadd.f32 %v2546, %v2651
    %2653 = vmatprep.mubr.bf16.mxu0 0
    %2654 = vmatmul.mubr.bf16.gmra.mrb[0].mxu0 %v840
    %v2655 = vpop.f32.mrb[0].mxu0
    %v2656 = vadd.f32 %v2547, %v2655
    %v2657 = vpop.f32.mrb[0].mxu0
    %v2658 = vadd.f32 %v2548, %v2657
    %v2659 = vpop.f32.mrb[0].mxu0
    %v2660 = vadd.f32 %v2549, %v2659
    %v2661 = vpop.f32.mrb[0].mxu0
    %v2662 = vadd.f32 %v2550, %v2661
    %2663 = vdwg.mxu0
    %v2664 = vadd.f32 %v2586, %v2626
    %v2665 = vadd.f32 %v2590, %v2630
    %v2666 = vadd.f32 %v2596, %v2636
    %v2667 = vadd.f32 %v2600, %v2640
    %v2668 = vadd.f32 %v2606, %v2646
    %v2669 = vadd.f32 %v2610, %v2650
    %v2670 = vadd.f32 %v2616, %v2656
    %v2671 = vadd.f32 %v2620, %v2660
    %v2672 = vadd.f32 %v2588, %v2628
    %v2673 = vadd.f32 %v2592, %v2632
    %v2674 = vadd.f32 %v2598, %v2638
    %v2675 = vadd.f32 %v2602, %v2642
    %v2676 = vadd.f32 %v2608, %v2648
    %v2677 = vadd.f32 %v2612, %v2652
    %v2678 = vadd.f32 %v2618, %v2658
    %v2679 = vadd.f32 %v2622, %v2662
    %v2680 = vadd.f32 %v2664, %v2665
    %v2681 = vadd.f32 %v2680, %v2666
    %v2682 = vadd.f32 %v2681, %v2667
    %v2683 = vadd.f32 %v2682, %v2668
    %v2684 = vadd.f32 %v2683, %v2669
    %v2685 = vadd.f32 %v2684, %v2670
    %v2686 = vadd.f32 %v2685, %v2671
    %v2687 = vrot.slane %v2686, 4
    %v2688 = vadd.f32 %v2686, %v2687
    %v2689 = vrot.slane %v2688, 2
    %v2690 = vadd.f32 %v2688, %v2689
    %v2691 = vrot.slane %v2690, 1
    %v2692 = vadd.f32 %v2690, %v2691
    %v2693 = vrcp.pop 64.0
    %v2694 = vmul.f32 %v2692, %v2693
    %v2695 = vxor.u32 %v2694, 2147483648
    %v2696 = vmul.f32 %v2695, 1.442695
    %v2697 = vpow.pop %v2696
    %v2698 = vadd.f32 %v2697, 1.0
    %v2699 = vrcp.pop %v2698
    %v2700 = vmul.f32 1.0, %v2699
    %v2701 = vlaneseq
    %v2702 = vand.u32 %v2701, 127
    %vm2703 = vcmp.lt.s32.totalorder %v2702, 32
    %v2704 = vsel %vm2703, %v2700, 0.0
    %v2705 = vpack.c.bf16 %v2704, %v2704
    %v2706 = vld [vmem:[%s5] sm:$0xf]
    %v2707 = vld [vmem:[%s5 + $0x4] sm:$0xf]
    %v2708 = vld [vmem:[%s5 + $0x8] sm:$0xf]
    %v2709 = vld [vmem:[%s5 + $0xc] sm:$0xf]
    %v2710 = vld [vmem:[%s5 + $0x10] sm:$0xf]
    %v2711 = vld [vmem:[%s5 + $0x14] sm:$0xf]
    %v2712 = vld [vmem:[%s5 + $0x18] sm:$0xf]
    %v2713 = vld [vmem:[%s5 + $0x1c] sm:$0xf]
    %v2714 = vld [vmem:[%s5 + $0x20] sm:$0xf]
    %v2715 = vld [vmem:[%s5 + $0x24] sm:$0xf]
    %v2716 = vld [vmem:[%s5 + $0x28] sm:$0xf]
    %v2717 = vld [vmem:[%s5 + $0x2c] sm:$0xf]
    %v2718 = vld [vmem:[%s5 + $0x30] sm:$0xf]
    %v2719 = vld [vmem:[%s5 + $0x34] sm:$0xf]
    %v2720 = vld [vmem:[%s5 + $0x38] sm:$0xf]
    %v2721 = vld [vmem:[%s5 + $0x3c] sm:$0xf]
    %v2738 = vunpack.c.l.b16 %v2706
    %v2739 = vunpack.c.l.b16 %v2707
    %v2740 = vunpack.c.l.b16 %v2708
    %v2741 = vunpack.c.l.b16 %v2709
    %v2742 = vunpack.c.l.b16 %v2710
    %v2743 = vunpack.c.l.b16 %v2711
    %v2744 = vunpack.c.l.b16 %v2712
    %v2745 = vunpack.c.l.b16 %v2713
    %v2746 = vunpack.c.l.b16 %v2714
    %v2747 = vunpack.c.l.b16 %v2715
    %v2748 = vunpack.c.l.b16 %v2716
    %v2749 = vunpack.c.l.b16 %v2717
    %v2750 = vunpack.c.l.b16 %v2718
    %v2751 = vunpack.c.l.b16 %v2719
    %v2752 = vunpack.c.l.b16 %v2720
    %v2753 = vunpack.c.l.b16 %v2721
    %v2754 = vpack.c.b16 %v2739, %v2738
    %v2755 = vpack.c.b16 %v2741, %v2740
    %v2756 = vpack.c.b16 %v2743, %v2742
    %v2757 = vpack.c.b16 %v2745, %v2744
    %v2758 = vpack.c.b16 %v2747, %v2746
    %v2759 = vpack.c.b16 %v2749, %v2748
    %v2760 = vpack.c.b16 %v2751, %v2750
    %v2761 = vpack.c.b16 %v2753, %v2752
    %2770 = vmatprep.subr.bf16.mxu0 0
    %2771 = vmatpush1.bf16.msra.mxu0 %v2754
    %2772 = vmatprep.subr.bf16.mxu0 0
    %2773 = vmatpush1.bf16.msra.mxu0 %v2755
    %2774 = vmatprep.subr.bf16.mxu0 0
    %2775 = vmatpush1.bf16.msra.mxu0 %v2756
    %2776 = vmatprep.subr.bf16.mxu0 0
    %2777 = vmatpush1.bf16.msra.mxu0 %v2757
    %2778 = vmatprep.subr.bf16.mxu0 0
    %2779 = vmatpush1.bf16.msra.mxu0 %v2758
    %2780 = vmatprep.subr.bf16.mxu0 0
    %2781 = vmatpush1.bf16.msra.mxu0 %v2759
    %2782 = vmatprep.subr.bf16.mxu0 0
    %2783 = vmatpush1.bf16.msra.mxu0 %v2760
    %2784 = vmatprep.subr.bf16.mxu0 0
    %2785 = vmatpush1.bf16.msra.mxu0 %v2761
    %2786 = vmatprep.subr.bf16.mxu0 0
    %2787 = vmatpush1.bf16.msra.mxu0 0
    %2788 = vmatprep.subr.bf16.mxu0 0
    %2789 = vmatpush1.bf16.msra.mxu0 0
    %2790 = vmatprep.subr.bf16.mxu0 0
    %2791 = vmatpush1.bf16.msra.mxu0 0
    %2792 = vmatprep.subr.bf16.mxu0 0
    %2793 = vmatpush1.bf16.msra.mxu0 0
    %2794 = vmatprep.subr.bf16.mxu0 0
    %2795 = vmatpush1.bf16.msra.mxu0 0
    %2796 = vmatprep.subr.bf16.mxu0 0
    %2797 = vmatpush1.bf16.msra.mxu0 0
    %2798 = vmatprep.subr.bf16.mxu0 0
    %2799 = vmatpush1.bf16.msra.mxu0 0
    %2800 = vmatprep.subr.bf16.mxu0 0
    %2801 = vmatpush1.bf16.msra.mxu0 0
    %2802 = vmatprep.mubr.bf16.mxu0 0
    %2803 = vmatmul.mubr.bf16.gmra.mrb[0].mxu0 %v2705
    %v2804 = vpop.f32.mrb[0].mxu0
    %v2805 = vadd.f32 0.0, %v2804
    %v2806 = vpop.f32.mrb[0].mxu0
    %v2807 = vpop.f32.mrb[0].mxu0
    %v2808 = vpop.f32.mrb[0].mxu0
    %2809 = vdwg.mxu0
    %v2810 = vpack.c.bf16 %v2665, %v2664
    %v2811 = vpack.c.bf16 %v2667, %v2666
    %v2812 = vpack.c.bf16 %v2669, %v2668
    %v2813 = vpack.c.bf16 %v2671, %v2670
    %v2814 = vpack.c.bf16 %v2673, %v2672
    %v2815 = vpack.c.bf16 %v2675, %v2674
    %v2816 = vpack.c.bf16 %v2677, %v2676
    %v2817 = vpack.c.bf16 %v2679, %v2678
    %v2818 = vpack.c.bf16 %v2805, %v2805
    %s2819 = sld [smem:[#allocation2 + $0x4]]
    %v2820 = vstv %s2819
    %2821 = vmatprep.subr.bf16.mxu0 0
    %2822 = vmatpush1.bf16.xpose.msra.mxu0 %v2810
    %2823 = vmatprep.subr.bf16.mxu0 0
    %2824 = vmatpush1.bf16.xpose.msra.mxu0 %v2811
    %2825 = vmatprep.subr.bf16.mxu0 0
    %2826 = vmatpush1.bf16.xpose.msra.mxu0 %v2812
    %2827 = vmatprep.subr.bf16.mxu0 0
    %2828 = vmatpush1.bf16.xpose.msra.mxu0 %v2813
    %2829 = vmatprep.subr.bf16.mxu0 0
    %2830 = vmatpush1.bf16.xpose.msra.mxu0 %v2814
    %2831 = vmatprep.subr.bf16.mxu0 0
    %2832 = vmatpush1.bf16.xpose.msra.mxu0 %v2815
    %2833 = vmatprep.subr.bf16.mxu0 0
    %2834 = vmatpush1.bf16.xpose.msra.mxu0 %v2816
    %2835 = vmatprep.subr.bf16.mxu0 0
    %2836 = vmatpush1.bf16.xpose.msra.mxu0 %v2817
    %2837 = vmatprep.subr.bf16.mxu0 0
    %2838 = vmatpush1.bf16.xpose.msra.mxu0 0
    %2839 = vmatprep.subr.bf16.mxu0 0
    %2840 = vmatpush1.bf16.xpose.msra.mxu0 0
    %2841 = vmatprep.subr.bf16.mxu0 0
    %2842 = vmatpush1.bf16.xpose.msra.mxu0 0
    %2843 = vmatprep.subr.bf16.mxu0 0
    %2844 = vmatpush1.bf16.xpose.msra.mxu0 0
    %2845 = vmatprep.subr.bf16.mxu0 0
    %2846 = vmatpush1.bf16.xpose.msra.mxu0 0
    %2847 = vmatprep.subr.bf16.mxu0 0
    %2848 = vmatpush1.bf16.xpose.msra.mxu0 0
    %2849 = vmatprep.subr.bf16.mxu0 0
    %2850 = vmatpush1.bf16.xpose.msra.mxu0 0
    %2851 = vmatprep.subr.bf16.mxu0 0
    %2852 = vmatpush1.bf16.xpose.msra.mxu0 0
    %2853 = vmatprep.mubr.bf16.mxu0 0
    %2854 = vmatmul.mubr.bf16.gmra.mrb[0].mxu0 %v2818
    %v2855 = vpop.f32.mrb[0].mxu0
    %v2856 = vadd.f32 %v2820, %v2855
    %v2857 = vpop.f32.mrb[0].mxu0
    %v2858 = vpop.f32.mrb[0].mxu0
    %v2859 = vpop.f32.mrb[0].mxu0
    %2860 = vdwg.mxu0
    %2861 = vst [vmem:[#allocation7] sm:$0x1] %v2856
    // Predicated region
    $region34: #{dgi2graphs_forward.1} parent=1 // pred_check
      _
    $region35: #{dgi2graphs_forward.1} parent=1 // pred_check_branch
      %2863 = sbr.rel (0) target = $region37
    $region36: #{dgi2graphs_forward.1} parent=1 // pred_region
      %s2865 = ssub.s32 16, 16
      %2866 = vsyncadd [#allocation4], %s2865
      %s2868 = sshll.u32 [#allocation7], 4
      %s2869 = int_to_ptr.vmem [resolvable:$true] %s2868
      %2871 = dma.vmem_to_hbm [thread:$0]  %s2869, 16, %s6, [#allocation4]
    $region37: #{dgi2graphs_forward.1} parent=1 // pred_fallthru
      _
    // Predicated region
    $region38: #{dgi2graphs_forward.1} parent=1 // pred_check
      _
    $region39: #{dgi2graphs_forward.1} parent=1 // pred_check_branch
      %2873 = sbr.rel (0) target = $region41
    $region40: #{dgi2graphs_forward.1} parent=1 // pred_region
      %2874 = dma.done [#allocation4], 16
    $region41: #{dgi2graphs_forward.1} parent=1 // pred_fallthru
      _
    %2875 = vsyncpa [#allocation3], 1
    %2876 = vsyncpa [#allocation4], 1
    %2877 = vsyncpa [#allocation5], 1

</llo_original>
